<compile_context>
chip_gen: v5e
topology: v5e:2x2
jax: 0.10.0
libtpu: 0.0.40
codegen_flags: <defaults>
</compile_context>

<pallas_src>
import functools
import math

import jax
import jax.numpy as jnp
from jax.experimental import pallas as pl
from jax.experimental.pallas import tpu as pltpu


def block_kernel(x_ref, am_ref,
                 wqkv_ref, bqkv_ref,
                 wp_ref, bp_ref,
                 w1_ref, b1_ref,
                 w2_ref, b2_ref,
                 o_ref,
                 qkv_ref, attn_ref,
                 *, num_heads, q_tile, gelu_tanh):
    S, D = x_ref.shape[1], x_ref.shape[2]
    H = num_heads
    W = D // H
    tS = q_tile
    cdt = wqkv_ref.dtype          # matmul-operand dtype (f32 or bf16)
    eps = 1e-6                    # matches nn.LayerNorm(dim, eps=1e-06)

    def layer_norm_f32(v):
        # gamma/beta are folded into the downstream projection (wrapper-side);
        # statistics always in f32.
        mu = jnp.mean(v, axis=-1, keepdims=True)
        var = jnp.mean(jnp.square(v - mu), axis=-1, keepdims=True)
        return (v - mu) * jax.lax.rsqrt(var + eps)

    # ---- once per batch element: LN1 + fused (S,D)x(D,3D) QKV projection ----
    # Grid axis 1 is "arbitrary", so qkv_ref persists across the query tiles of
    # this batch element; it is rebuilt when the batch index advances (q == 0).
    @pl.when(pl.program_id(1) == 0)
    def _():
        xf = x_ref[0].astype(jnp.float32)                       # (S, D)
        xn = layer_norm_f32(xf).astype(cdt)
        qkv = jnp.dot(xn, wqkv_ref[...],
                      preferred_element_type=jnp.float32) + bqkv_ref[...]
        qkv_ref[...] = qkv.astype(cdt)

    q_start = pl.multiple_of(pl.program_id(1) * tS, tS)
    x_q = x_ref[0, pl.ds(q_start, tS), :].astype(jnp.float32)   # residual input (f32)
    q_all = qkv_ref[pl.ds(q_start, tS), pl.ds(0, D)]            # (tS, D)  (1/sqrt(W) folded in)
    k_all = qkv_ref[:, pl.ds(D, D)]                             # (S, D)
    v_all = qkv_ref[:, pl.ds(2 * D, D)]                         # (S, D)
    am = am_ref[0]                                              # (1, S) additive key mask

    # ---- multi-head attention (static unroll; head outputs -> lane-dense scratch) ----
    for h in range(H):
        sl = slice(h * W, (h + 1) * W)
        s = jnp.dot(q_all[:, sl], k_all[:, sl].T,
                    preferred_element_type=jnp.float32) + am    # (tS, S)
        s = s - jnp.max(s, axis=-1, keepdims=True)
        p = jnp.exp(s)
        denom = jnp.sum(p, axis=-1, keepdims=True)
        # EUP reciprocal + one Newton step: full f32 accuracy, no VALU divide.
        r = pl.reciprocal(denom, approx=True)
        r = r * (2.0 - denom * r)
        pv = jnp.dot(p.astype(cdt), v_all[:, sl],
                     preferred_element_type=jnp.float32)        # (tS, W)
        attn_ref[:, sl] = (pv * r).astype(cdt)                  # normalize AFTER PV matmul

    attn = attn_ref[...]                                        # (tS, D) lane-dense

    h1 = jnp.dot(attn, wp_ref[...], preferred_element_type=jnp.float32) + bp_ref[...]
    # TODO(synk): dropout is stochastic in train mode; eval-mode (identity) only.
    x1 = x_q + h1                                               # residual 1 (f32 skip)

    # ---- position-wise FFN (LN2 gamma/beta folded into w1/b1) ----
    xn2 = layer_norm_f32(x1).astype(cdt)
    f = jnp.dot(xn2, w1_ref[...], preferred_element_type=jnp.float32) + b1_ref[...]
    if gelu_tanh:
        # tanh-approx GELU runs on the otherwise-idle EUP slot (v5e relief).
        f = 0.5 * f * (1.0 + jnp.tanh(0.7978845608028654 * (f + 0.044715 * f * f * f)))
    else:
        # exact (erf) GELU — matches torch.nn.functional.gelu default
        f = 0.5 * f * (1.0 + jax.lax.erf(f * 0.7071067811865476))
    f = jnp.dot(f.astype(cdt), w2_ref[...], preferred_element_type=jnp.float32) + b2_ref[...]

    o_ref[0] = (x1 + f).astype(o_ref.dtype)                     # residual 2


def _pick_vmem_limit_bytes():
    """Chip-generation-dependent scoped-VMEM limit."""
    try:
        kind = jax.devices()[0].device_kind.lower()
    except Exception:  # pragma: no cover - defensive (non-TPU trace)
        kind = ""
    if "7" in kind:               # v7x: 64 MiB physical VMEM per TensorCore
        return 56 * 1024 * 1024
    return 96 * 1024 * 1024       # v5e / v6e: 128 MiB physical VMEM


@functools.partial(jax.jit, static_argnums=(3,),
                   static_argnames=("compute_dtype", "seq_tile", "gelu_tanh"))
def vit_block(x, mask, params, num_heads, *,
              compute_dtype=jnp.bfloat16, seq_tile=256, gelu_tanh=False):
    """x: (B, S, D), mask: (B, S) in {0,1}.  Returns (B, S, D) in x.dtype."""
    B, S, D = x.shape
    H = num_heads
    W = D // H
    cdt = compute_dtype

    # ---- sequence padding + query-tile selection (sublane/lane friendly) ----
    tile = max(8, (int(seq_tile) // 8) * 8)
    s_min = -(-S // 8) * 8
    if s_min <= tile:
        S_pad, tS = s_min, s_min              # single query tile
    else:
        tS = tile
        S_pad = -(-S // tS) * tS              # pad S up to a multiple of the tile
    n_qt = S_pad // tS
    pad = S_pad - S

    if pad:
        x_in = jnp.pad(x, ((0, 0), (0, pad), (0, 0)))
        mask_in = jnp.pad(mask.astype(jnp.float32), ((0, 0), (0, pad)))
    else:
        x_in = x
        mask_in = mask.astype(jnp.float32)
    # Additive key mask precomputed on the host: 0 valid, -1e4 masked/pad keys.
    addmask = (-10000.0 * (1.0 - mask_in)).reshape(B, 1, S_pad)

    # ---------- trace/host-time parameter fusion (free w.r.t. the kernel) ----------
    g1 = params["ln1_g"].reshape(-1)
    be1 = params["ln1_b"].reshape(-1)
    g2 = params["ln2_g"].reshape(-1)
    be2 = params["ln2_b"].reshape(-1)

    # Fused QKV weight/bias.
    wqkv = jnp.concatenate([params["wq"], params["wk"], params["wv"]], axis=1)  # (D, 3D)
    bqkv = jnp.concatenate([params["bq"], params["bk"], params["bv"]], axis=1)  # (1, 3D)
    # Fold LayerNorm1 gamma/beta into the QKV projection (bias fold uses the
    # unscaled weight, then the weight is gamma-scaled).
    bqkv = bqkv + be1[None, :] @ wqkv
    wqkv = g1[:, None] * wqkv
    # Fold the 1/sqrt(W) attention scale into the Q third.
    scale = 1.0 / math.sqrt(W)
    wqkv = wqkv.at[:, :D].multiply(scale)
    bqkv = bqkv.at[:, :D].multiply(scale)
    # Fold LayerNorm2 gamma/beta into fc1.
    b1 = params["b1"] + be2[None, :] @ params["w1"]
    w1 = g2[:, None] * params["w1"]

    weights = [
        wqkv.astype(cdt), bqkv.astype(jnp.float32),
        params["wp"].astype(cdt), params["bp"].astype(jnp.float32),
        w1.astype(cdt), b1.astype(jnp.float32),
        params["w2"].astype(cdt), params["b2"].astype(jnp.float32),
    ]

    # Weights/biases: whole-array, single VMEM copy, NOT part of the grid
    # pipeline -> no double buffering (halves weight VMEM; key on v7x).
    weight_spec = pl.BlockSpec(memory_space=pltpu.MemorySpace.VMEM)

    in_specs = [
        pl.BlockSpec((1, S_pad, D), lambda b, q: (b, 0, 0)),    # x: full seq (K/V need all rows)
        pl.BlockSpec((1, 1, S_pad), lambda b, q: (b, 0, 0)),    # additive key mask
    ] + [weight_spec] * len(weights)
    out_specs = pl.BlockSpec((1, tS, D), lambda b, q: (b, q, 0))

    # In-place update is only safe when the whole sequence is one query tile.
    io_aliases = {0: 0} if n_qt == 1 else {}

    out = pl.pallas_call(
        functools.partial(block_kernel, num_heads=H, q_tile=tS, gelu_tanh=gelu_tanh),
        out_shape=jax.ShapeDtypeStruct((B, S_pad, D), x.dtype),
        grid=(B, n_qt),
        in_specs=in_specs,
        out_specs=out_specs,
        scratch_shapes=[
            pltpu.VMEM((S_pad, 3 * D), cdt),   # resident fused QKV (per batch element)
            pltpu.VMEM((tS, D), cdt),          # lane-dense attention output slab
        ],
        input_output_aliases=io_aliases,
        compiler_params=pltpu.CompilerParams(
            # q axis carries the resident QKV scratch -> must be "arbitrary";
            # batch stays "parallel" for v7x's two TensorCores.
            # NOTE: for B == 1 on v7x, add an explicit parallel split (e.g.
            # head groups) so both cores are used.
            dimension_semantics=("parallel", "arbitrary"),
            vmem_limit_bytes=_pick_vmem_limit_bytes(),
        ),
    )(x_in, addmask, *weights)

    return out[:, :S, :] if pad else out


def init_params(key, dim, ff_dim):
    """Deterministic init matching torch nn.Linear/LayerNorm shapes (non-trivial
    gamma/beta so the LayerNorm-folding path is actually exercised)."""
    ks = jax.random.split(key, 10)

    def linear(k, fan_in, fan_out):
        bound = 1.0 / math.sqrt(fan_in)
        kw, kb = jax.random.split(k)
        w = jax.random.uniform(kw, (fan_in, fan_out), jnp.float32, -bound, bound)
        b = jax.random.uniform(kb, (1, fan_out), jnp.float32, -bound, bound)
        return w, b

    wq, bq = linear(ks[0], dim, dim)
    wk, bk = linear(ks[1], dim, dim)
    wv, bv = linear(ks[2], dim, dim)
    wp, bp = linear(ks[3], dim, dim)
    w1, b1 = linear(ks[4], dim, ff_dim)
    w2, b2 = linear(ks[5], ff_dim, dim)
    return {
        "ln1_g": 1.0 + 0.1 * jax.random.normal(ks[6], (1, dim), jnp.float32),
        "ln1_b": 0.1 * jax.random.normal(ks[7], (1, dim), jnp.float32),
        "ln2_g": 1.0 + 0.1 * jax.random.normal(ks[8], (1, dim), jnp.float32),
        "ln2_b": 0.1 * jax.random.normal(ks[9], (1, dim), jnp.float32),
        "wq": wq, "bq": bq, "wk": wk, "bk": bk, "wv": wv, "bv": bv,
        "wp": wp, "bp": bp,
        "w1": w1, "b1": b1, "w2": w2, "b2": b2,
    }


def reference_block(x, mask, params, num_heads):
    """Pure-JAX reference mirroring the PyTorch Block forward (eval mode)."""
    B, S, D = x.shape
    W = D // num_heads
    eps = 1e-6

    def ln(v, g, b):
        mu = jnp.mean(v, axis=-1, keepdims=True)
        var = jnp.mean((v - mu) ** 2, axis=-1, keepdims=True)
        return (v - mu) / jnp.sqrt(var + eps) * g + b

    xn = ln(x, params["ln1_g"], params["ln1_b"])
    q = xn @ params["wq"] + params["bq"]
    k = xn @ params["wk"] + params["bk"]
    v = xn @ params["wv"] + params["bv"]
    q, k, v = (t.reshape(B, S, num_heads, W).transpose(0, 2, 1, 3) for t in (q, k, v))
    scores = q @ jnp.swapaxes(k, -2, -1) / math.sqrt(W)
    m = mask[:, None, None, :].astype(jnp.float32)
    scores = scores - 10000.0 * (1.0 - m)
    p = jax.nn.softmax(scores, axis=-1)
    h = (p @ v).transpose(0, 2, 1, 3).reshape(B, S, D)
    h = h @ params["wp"] + params["bp"]
    x = x + h
    xn2 = ln(x, params["ln2_g"], params["ln2_b"])
    f = xn2 @ params["w1"] + params["b1"]
    f = 0.5 * f * (1.0 + jax.lax.erf(f / math.sqrt(2.0)))
    f = f @ params["w2"] + params["b2"]
    return x + f


if __name__ == "__main__":
    # S deliberately NOT a multiple of 8 -> exercises the wrapper-side padding.
    B, S, D, H, FF = 2, 13, 32, 4, 64

    key = jax.random.PRNGKey(0)
    kx, kp = jax.random.split(key)
    x = jax.random.normal(kx, (B, S, D), jnp.float32)
    # variable-length key mask: first sample full, second has 3 masked keys
    lengths = jnp.array([[S], [S - 3]], dtype=jnp.int32)
    mask = (jnp.arange(S)[None, :] < lengths).astype(jnp.float32)

    params = init_params(kp, D, FF)
    ref = reference_block(x, mask, params, num_heads=H)

    # f32 compute, seq_tile=8 -> S padded to 16, two query tiles: exercises the
    # padding path and the resident-QKV reuse across tiles.  Strict check.
    out_f32 = jax.block_until_ready(
        vit_block(x, mask, params, H, compute_dtype=jnp.float32, seq_tile=8))
    assert out_f32.shape == (B, S, D)
    err32 = float(jnp.max(jnp.abs(out_f32 - ref)))
    assert jnp.allclose(out_f32, ref, atol=1e-4, rtol=1e-4), f"f32 max err {err32}"

    # bf16 compute (the v5e/v6e/v7x performance configuration), default tiling
    # (single query tile), tanh-approx GELU.  Residuals stay f32 in-kernel, so
    # only matmul operands are quantized -> loose sanity bound.
    out_bf16 = jax.block_until_ready(
        vit_block(x, mask, params, H, compute_dtype=jnp.bfloat16, gelu_tanh=True))
    errbf = float(jnp.max(jnp.abs(out_bf16 - ref)))
    rel_rms = float(jnp.sqrt(jnp.mean((out_bf16 - ref) ** 2))
                    / jnp.sqrt(jnp.mean(ref ** 2)))
    assert errbf < 0.5 and rel_rms < 0.1, f"bf16 err {errbf}, rel rms {rel_rms}"

    print("KERNEL_OK")
</pallas_src>

<mosaic_0001>
module attributes {stable_mosaic.version = 11 : i64} {
  func.func @block_kernel(%arg0: i32, %arg1: i32, %arg2: memref<1x16x32xf32, #tpu.memory_space<vmem>>, %arg3: memref<1x1x16xf32, #tpu.memory_space<vmem>>, %arg4: memref<32x96xf32, #tpu.memory_space<vmem>>, %arg5: memref<1x96xf32, #tpu.memory_space<vmem>>, %arg6: memref<32x32xf32, #tpu.memory_space<vmem>>, %arg7: memref<1x32xf32, #tpu.memory_space<vmem>>, %arg8: memref<32x64xf32, #tpu.memory_space<vmem>>, %arg9: memref<1x64xf32, #tpu.memory_space<vmem>>, %arg10: memref<64x32xf32, #tpu.memory_space<vmem>>, %arg11: memref<1x32xf32, #tpu.memory_space<vmem>>, %arg12: memref<1x8x32xf32, #tpu.memory_space<vmem>>, %arg13: memref<16x96xf32, #tpu.memory_space<vmem>>, %arg14: memref<8x32xf32, #tpu.memory_space<vmem>>) attributes {dimension_semantics = [#tpu.dimension_semantics<parallel>, #tpu.dimension_semantics<arbitrary>], iteration_bounds = array<i64: 2, 2>, scalar_prefetch = 0 : i64, scratch_operands = 2 : i64, tpu.core_type = #tpu.core_type<tc>, window_params = [{transform_indices = @transform_0, window_bounds = array<i64: 1, 16, 32>}, {transform_indices = @transform_1, window_bounds = array<i64: 1, 1, 16>}, {pipeline_mode = #tpu.pipeline_mode<synchronous>, transform_indices = @transform_2, window_bounds = array<i64: 32, 96>}, {pipeline_mode = #tpu.pipeline_mode<synchronous>, transform_indices = @transform_3, window_bounds = array<i64: 1, 96>}, {pipeline_mode = #tpu.pipeline_mode<synchronous>, transform_indices = @transform_4, window_bounds = array<i64: 32, 32>}, {pipeline_mode = #tpu.pipeline_mode<synchronous>, transform_indices = @transform_5, window_bounds = array<i64: 1, 32>}, {pipeline_mode = #tpu.pipeline_mode<synchronous>, transform_indices = @transform_6, window_bounds = array<i64: 32, 64>}, {pipeline_mode = #tpu.pipeline_mode<synchronous>, transform_indices = @transform_7, window_bounds = array<i64: 1, 64>}, {pipeline_mode = #tpu.pipeline_mode<synchronous>, transform_indices = @transform_8, window_bounds = array<i64: 64, 32>}, {pipeline_mode = #tpu.pipeline_mode<synchronous>, transform_indices = @transform_9, window_bounds = array<i64: 1, 32>}, {transform_indices = @transform_10, window_bounds = array<i64: 1, 8, 32>}]} {
    %c0_i32 = arith.constant 0 : i32
    %0 = arith.cmpi eq, %arg1, %c0_i32 : i32
    %1 = arith.extui %0 : i1 to i32
    %c0_i32_0 = arith.constant 0 : i32
    %2 = arith.cmpi ne, %1, %c0_i32_0 : i32
    scf.if %2 {
      %c0_60 = arith.constant 0 : index
      %c0_61 = arith.constant 0 : index
      %c0_62 = arith.constant 0 : index
      %153 = vector.load %arg2[%c0_60, %c0_61, %c0_62] : memref<1x16x32xf32, #tpu.memory_space<vmem>>, vector<1x16x32xf32>
      %154 = vector.shape_cast %153 : vector<1x16x32xf32> to vector<16x32xf32>
      %cst_63 = arith.constant dense<0.000000e+00> : vector<16xf32>
      %155 = vector.multi_reduction <add>, %154, %cst_63 [1] : vector<16x32xf32> to vector<16xf32>
      %156 = vector.shape_cast %155 : vector<16xf32> to vector<16x1xf32>
      %cst_64 = arith.constant 3.200000e+01 : f32
      %157 = vector.broadcast %cst_64 : f32 to vector<16x1xf32>
      %158 = arith.divf %156, %157 : vector<16x1xf32>
      %159 = vector.broadcast %158 : vector<16x1xf32> to vector<16x32xf32>
      %160 = arith.subf %154, %159 : vector<16x32xf32>
      %161 = arith.mulf %160, %160 : vector<16x32xf32>
      %cst_65 = arith.constant dense<0.000000e+00> : vector<16xf32>
      %162 = vector.multi_reduction <add>, %161, %cst_65 [1] : vector<16x32xf32> to vector<16xf32>
      %163 = vector.shape_cast %162 : vector<16xf32> to vector<16x1xf32>
      %cst_66 = arith.constant 3.200000e+01 : f32
      %164 = vector.broadcast %cst_66 : f32 to vector<16x1xf32>
      %165 = arith.divf %163, %164 : vector<16x1xf32>
      %166 = vector.broadcast %158 : vector<16x1xf32> to vector<16x32xf32>
      %167 = arith.subf %154, %166 : vector<16x32xf32>
      %cst_67 = arith.constant 9.99999997E-7 : f32
      %168 = vector.broadcast %cst_67 : f32 to vector<16x1xf32>
      %169 = arith.addf %165, %168 : vector<16x1xf32>
      %170 = math.rsqrt %169 : vector<16x1xf32>
      %171 = vector.broadcast %170 : vector<16x1xf32> to vector<16x32xf32>
      %172 = arith.mulf %167, %171 : vector<16x32xf32>
      %c0_68 = arith.constant 0 : index
      %c0_69 = arith.constant 0 : index
      %173 = vector.load %arg4[%c0_68, %c0_69] : memref<32x96xf32, #tpu.memory_space<vmem>>, vector<32x96xf32>
      %cst_70 = arith.constant dense<0.000000e+00> : vector<16x96xf32>
      %174 = tpu.matmul %172, %173, %cst_70 {dimension_numbers = #tpu.dot_dimension_numbers<[1], [0], [0], [1], [0, 0, 1, 1], [], []>} : vector<16x32xf32>, vector<32x96xf32>, vector<16x96xf32> -> vector<16x96xf32>
      %c0_71 = arith.constant 0 : index
      %c0_72 = arith.constant 0 : index
      %175 = vector.load %arg5[%c0_71, %c0_72] : memref<1x96xf32, #tpu.memory_space<vmem>>, vector<1x96xf32>
      %176 = vector.broadcast %175 : vector<1x96xf32> to vector<16x96xf32>
      %177 = arith.addf %174, %176 : vector<16x96xf32>
      %c0_73 = arith.constant 0 : index
      %c0_74 = arith.constant 0 : index
      %178 = vector.load %arg13[%c0_73, %c0_74] : memref<16x96xf32, #tpu.memory_space<vmem>>, vector<16x96xf32>
      tpu.vector_store %arg13[%c0_73, %c0_74], %177 {strides = array<i32>} : memref<16x96xf32, #tpu.memory_space<vmem>>, vector<16x96xf32>,
    } else {
    }
    %c8_i32 = arith.constant 8 : i32
    %3 = arith.muli %arg1, %c8_i32 : i32
    %4 = tpu.assume_multiple %3, 8 : i32
    %c0 = arith.constant 0 : index
    %5 = arith.index_cast %4 : i32 to index
    %c0_1 = arith.constant 0 : index
    %6 = vector.load %arg2[%c0, %5, %c0_1] : memref<1x16x32xf32, #tpu.memory_space<vmem>>, vector<1x8x32xf32>
    %7 = vector.shape_cast %6 : vector<1x8x32xf32> to vector<8x32xf32>
    %8 = arith.index_cast %4 : i32 to index
    %c0_2 = arith.constant 0 : index
    %9 = vector.load %arg13[%8, %c0_2] : memref<16x96xf32, #tpu.memory_space<vmem>>, vector<8x32xf32>
    %c0_3 = arith.constant 0 : index
    %c32 = arith.constant 32 : index
    %10 = vector.load %arg13[%c0_3, %c32] : memref<16x96xf32, #tpu.memory_space<vmem>>, vector<16x32xf32>
    %c0_4 = arith.constant 0 : index
    %c64 = arith.constant 64 : index
    %11 = vector.load %arg13[%c0_4, %c64] : memref<16x96xf32, #tpu.memory_space<vmem>>, vector<16x32xf32>
    %c0_5 = arith.constant 0 : index
    %c0_6 = arith.constant 0 : index
    %c0_7 = arith.constant 0 : index
    %12 = vector.load %arg3[%c0_5, %c0_6, %c0_7] : memref<1x1x16xf32, #tpu.memory_space<vmem>>, vector<1x1x16xf32>
    %13 = vector.shape_cast %12 : vector<1x1x16xf32> to vector<1x16xf32>
    %14 = vector.extract_strided_slice %9 {offsets = [0, 0], sizes = [8, 8], strides = [1, 1]} : vector<8x32xf32> to vector<8x8xf32>
    %15 = vector.extract_strided_slice %10 {offsets = [0, 0], sizes = [16, 8], strides = [1, 1]} : vector<16x32xf32> to vector<16x8xf32>
    %16 = tpu.transpose %15, [1, 0] : vector<16x8xf32> -> vector<8x16xf32>
    %cst = arith.constant dense<0.000000e+00> : vector<8x16xf32>
    %17 = tpu.matmul %14, %16, %cst {dimension_numbers = #tpu.dot_dimension_numbers<[1], [0], [0], [1], [0, 0, 1, 1], [], []>} : vector<8x8xf32>, vector<8x16xf32>, vector<8x16xf32> -> vector<8x16xf32>
    %18 = vector.broadcast %13 : vector<1x16xf32> to vector<8x16xf32>
    %19 = arith.addf %17, %18 : vector<8x16xf32>
    %cst_8 = arith.constant dense<0xFF800000> : vector<8xf32>
    %20 = vector.multi_reduction <maximumf>, %19, %cst_8 [1] : vector<8x16xf32> to vector<8xf32>
    %21 = vector.shape_cast %20 : vector<8xf32> to vector<8x1xf32>
    %22 = vector.broadcast %21 : vector<8x1xf32> to vector<8x16xf32>
    %23 = arith.subf %19, %22 : vector<8x16xf32>
    %24 = math.exp %23 : vector<8x16xf32>
    %cst_9 = arith.constant dense<0.000000e+00> : vector<8xf32>
    %25 = vector.multi_reduction <add>, %24, %cst_9 [1] : vector<8x16xf32> to vector<8xf32>
    %26 = vector.shape_cast %25 : vector<8xf32> to vector<8x1xf32>
    %27 = tpu.reciprocal %26 {approx = true} : vector<8x1xf32> -> vector<8x1xf32>
    %28 = arith.mulf %26, %27 : vector<8x1xf32>
    %cst_10 = arith.constant 2.000000e+00 : f32
    %29 = vector.broadcast %cst_10 : f32 to vector<8x1xf32>
    %30 = arith.subf %29, %28 : vector<8x1xf32>
    %31 = arith.mulf %27, %30 : vector<8x1xf32>
    %32 = vector.extract_strided_slice %11 {offsets = [0, 0], sizes = [16, 8], strides = [1, 1]} : vector<16x32xf32> to vector<16x8xf32>
    %cst_11 = arith.constant dense<0.000000e+00> : vector<8x8xf32>
    %33 = tpu.matmul %24, %32, %cst_11 {dimension_numbers = #tpu.dot_dimension_numbers<[1], [0], [0], [1], [0, 0, 1, 1], [], []>} : vector<8x16xf32>, vector<16x8xf32>, vector<8x8xf32> -> vector<8x8xf32>
    %34 = vector.broadcast %31 : vector<8x1xf32> to vector<8x8xf32>
    %35 = arith.mulf %33, %34 : vector<8x8xf32>
    %c0_12 = arith.constant 0 : index
    %c0_13 = arith.constant 0 : index
    %36 = vector.load %arg14[%c0_12, %c0_13] : memref<8x32xf32, #tpu.memory_space<vmem>>, vector<8x8xf32>
    tpu.vector_store %arg14[%c0_12, %c0_13], %35 {strides = array<i32>} : memref<8x32xf32, #tpu.memory_space<vmem>>, vector<8x8xf32>,
    %37 = vector.extract_strided_slice %9 {offsets = [0, 8], sizes = [8, 8], strides = [1, 1]} : vector<8x32xf32> to vector<8x8xf32>
    %38 = vector.extract_strided_slice %10 {offsets = [0, 8], sizes = [16, 8], strides = [1, 1]} : vector<16x32xf32> to vector<16x8xf32>
    %39 = tpu.transpose %38, [1, 0] : vector<16x8xf32> -> vector<8x16xf32>
    %cst_14 = arith.constant dense<0.000000e+00> : vector<8x16xf32>
    %40 = tpu.matmul %37, %39, %cst_14 {dimension_numbers = #tpu.dot_dimension_numbers<[1], [0], [0], [1], [0, 0, 1, 1], [], []>} : vector<8x8xf32>, vector<8x16xf32>, vector<8x16xf32> -> vector<8x16xf32>
    %41 = vector.broadcast %13 : vector<1x16xf32> to vector<8x16xf32>
    %42 = arith.addf %40, %41 : vector<8x16xf32>
    %cst_15 = arith.constant dense<0xFF800000> : vector<8xf32>
    %43 = vector.multi_reduction <maximumf>, %42, %cst_15 [1] : vector<8x16xf32> to vector<8xf32>
    %44 = vector.shape_cast %43 : vector<8xf32> to vector<8x1xf32>
    %45 = vector.broadcast %44 : vector<8x1xf32> to vector<8x16xf32>
    %46 = arith.subf %42, %45 : vector<8x16xf32>
    %47 = math.exp %46 : vector<8x16xf32>
    %cst_16 = arith.constant dense<0.000000e+00> : vector<8xf32>
    %48 = vector.multi_reduction <add>, %47, %cst_16 [1] : vector<8x16xf32> to vector<8xf32>
    %49 = vector.shape_cast %48 : vector<8xf32> to vector<8x1xf32>
    %50 = tpu.reciprocal %49 {approx = true} : vector<8x1xf32> -> vector<8x1xf32>
    %51 = arith.mulf %49, %50 : vector<8x1xf32>
    %cst_17 = arith.constant 2.000000e+00 : f32
    %52 = vector.broadcast %cst_17 : f32 to vector<8x1xf32>
    %53 = arith.subf %52, %51 : vector<8x1xf32>
    %54 = arith.mulf %50, %53 : vector<8x1xf32>
    %55 = vector.extract_strided_slice %11 {offsets = [0, 8], sizes = [16, 8], strides = [1, 1]} : vector<16x32xf32> to vector<16x8xf32>
    %cst_18 = arith.constant dense<0.000000e+00> : vector<8x8xf32>
    %56 = tpu.matmul %47, %55, %cst_18 {dimension_numbers = #tpu.dot_dimension_numbers<[1], [0], [0], [1], [0, 0, 1, 1], [], []>} : vector<8x16xf32>, vector<16x8xf32>, vector<8x8xf32> -> vector<8x8xf32>
    %57 = vector.broadcast %54 : vector<8x1xf32> to vector<8x8xf32>
    %58 = arith.mulf %56, %57 : vector<8x8xf32>
    %c0_19 = arith.constant 0 : index
    %c8 = arith.constant 8 : index
    %59 = vector.load %arg14[%c0_19, %c8] : memref<8x32xf32, #tpu.memory_space<vmem>>, vector<8x8xf32>
    tpu.vector_store %arg14[%c0_19, %c8], %58 {strides = array<i32>} : memref<8x32xf32, #tpu.memory_space<vmem>>, vector<8x8xf32>,
    %60 = vector.extract_strided_slice %9 {offsets = [0, 16], sizes = [8, 8], strides = [1, 1]} : vector<8x32xf32> to vector<8x8xf32>
    %61 = vector.extract_strided_slice %10 {offsets = [0, 16], sizes = [16, 8], strides = [1, 1]} : vector<16x32xf32> to vector<16x8xf32>
    %62 = tpu.transpose %61, [1, 0] : vector<16x8xf32> -> vector<8x16xf32>
    %cst_20 = arith.constant dense<0.000000e+00> : vector<8x16xf32>
    %63 = tpu.matmul %60, %62, %cst_20 {dimension_numbers = #tpu.dot_dimension_numbers<[1], [0], [0], [1], [0, 0, 1, 1], [], []>} : vector<8x8xf32>, vector<8x16xf32>, vector<8x16xf32> -> vector<8x16xf32>
    %64 = vector.broadcast %13 : vector<1x16xf32> to vector<8x16xf32>
    %65 = arith.addf %63, %64 : vector<8x16xf32>
    %cst_21 = arith.constant dense<0xFF800000> : vector<8xf32>
    %66 = vector.multi_reduction <maximumf>, %65, %cst_21 [1] : vector<8x16xf32> to vector<8xf32>
    %67 = vector.shape_cast %66 : vector<8xf32> to vector<8x1xf32>
    %68 = vector.broadcast %67 : vector<8x1xf32> to vector<8x16xf32>
    %69 = arith.subf %65, %68 : vector<8x16xf32>
    %70 = math.exp %69 : vector<8x16xf32>
    %cst_22 = arith.constant dense<0.000000e+00> : vector<8xf32>
    %71 = vector.multi_reduction <add>, %70, %cst_22 [1] : vector<8x16xf32> to vector<8xf32>
    %72 = vector.shape_cast %71 : vector<8xf32> to vector<8x1xf32>
    %73 = tpu.reciprocal %72 {approx = true} : vector<8x1xf32> -> vector<8x1xf32>
    %74 = arith.mulf %72, %73 : vector<8x1xf32>
    %cst_23 = arith.constant 2.000000e+00 : f32
    %75 = vector.broadcast %cst_23 : f32 to vector<8x1xf32>
    %76 = arith.subf %75, %74 : vector<8x1xf32>
    %77 = arith.mulf %73, %76 : vector<8x1xf32>
    %78 = vector.extract_strided_slice %11 {offsets = [0, 16], sizes = [16, 8], strides = [1, 1]} : vector<16x32xf32> to vector<16x8xf32>
    %cst_24 = arith.constant dense<0.000000e+00> : vector<8x8xf32>
    %79 = tpu.matmul %70, %78, %cst_24 {dimension_numbers = #tpu.dot_dimension_numbers<[1], [0], [0], [1], [0, 0, 1, 1], [], []>} : vector<8x16xf32>, vector<16x8xf32>, vector<8x8xf32> -> vector<8x8xf32>
    %80 = vector.broadcast %77 : vector<8x1xf32> to vector<8x8xf32>
    %81 = arith.mulf %79, %80 : vector<8x8xf32>
    %c0_25 = arith.constant 0 : index
    %c16 = arith.constant 16 : index
    %82 = vector.load %arg14[%c0_25, %c16] : memref<8x32xf32, #tpu.memory_space<vmem>>, vector<8x8xf32>
    tpu.vector_store %arg14[%c0_25, %c16], %81 {strides = array<i32>} : memref<8x32xf32, #tpu.memory_space<vmem>>, vector<8x8xf32>,
    %83 = vector.extract_strided_slice %9 {offsets = [0, 24], sizes = [8, 8], strides = [1, 1]} : vector<8x32xf32> to vector<8x8xf32>
    %84 = vector.extract_strided_slice %10 {offsets = [0, 24], sizes = [16, 8], strides = [1, 1]} : vector<16x32xf32> to vector<16x8xf32>
    %85 = tpu.transpose %84, [1, 0] : vector<16x8xf32> -> vector<8x16xf32>
    %cst_26 = arith.constant dense<0.000000e+00> : vector<8x16xf32>
    %86 = tpu.matmul %83, %85, %cst_26 {dimension_numbers = #tpu.dot_dimension_numbers<[1], [0], [0], [1], [0, 0, 1, 1], [], []>} : vector<8x8xf32>, vector<8x16xf32>, vector<8x16xf32> -> vector<8x16xf32>
    %87 = vector.broadcast %13 : vector<1x16xf32> to vector<8x16xf32>
    %88 = arith.addf %86, %87 : vector<8x16xf32>
    %cst_27 = arith.constant dense<0xFF800000> : vector<8xf32>
    %89 = vector.multi_reduction <maximumf>, %88, %cst_27 [1] : vector<8x16xf32> to vector<8xf32>
    %90 = vector.shape_cast %89 : vector<8xf32> to vector<8x1xf32>
    %91 = vector.broadcast %90 : vector<8x1xf32> to vector<8x16xf32>
    %92 = arith.subf %88, %91 : vector<8x16xf32>
    %93 = math.exp %92 : vector<8x16xf32>
    %cst_28 = arith.constant dense<0.000000e+00> : vector<8xf32>
    %94 = vector.multi_reduction <add>, %93, %cst_28 [1] : vector<8x16xf32> to vector<8xf32>
    %95 = vector.shape_cast %94 : vector<8xf32> to vector<8x1xf32>
    %96 = tpu.reciprocal %95 {approx = true} : vector<8x1xf32> -> vector<8x1xf32>
    %97 = arith.mulf %95, %96 : vector<8x1xf32>
    %cst_29 = arith.constant 2.000000e+00 : f32
    %98 = vector.broadcast %cst_29 : f32 to vector<8x1xf32>
    %99 = arith.subf %98, %97 : vector<8x1xf32>
    %100 = arith.mulf %96, %99 : vector<8x1xf32>
    %101 = vector.extract_strided_slice %11 {offsets = [0, 24], sizes = [16, 8], strides = [1, 1]} : vector<16x32xf32> to vector<16x8xf32>
    %cst_30 = arith.constant dense<0.000000e+00> : vector<8x8xf32>
    %102 = tpu.matmul %93, %101, %cst_30 {dimension_numbers = #tpu.dot_dimension_numbers<[1], [0], [0], [1], [0, 0, 1, 1], [], []>} : vector<8x16xf32>, vector<16x8xf32>, vector<8x8xf32> -> vector<8x8xf32>
    %103 = vector.broadcast %100 : vector<8x1xf32> to vector<8x8xf32>
    %104 = arith.mulf %102, %103 : vector<8x8xf32>
    %c0_31 = arith.constant 0 : index
    %c24 = arith.constant 24 : index
    %105 = vector.load %arg14[%c0_31, %c24] : memref<8x32xf32, #tpu.memory_space<vmem>>, vector<8x8xf32>
    tpu.vector_store %arg14[%c0_31, %c24], %104 {strides = array<i32>} : memref<8x32xf32, #tpu.memory_space<vmem>>, vector<8x8xf32>,
    %c0_32 = arith.constant 0 : index
    %c0_33 = arith.constant 0 : index
    %106 = vector.load %arg14[%c0_32, %c0_33] : memref<8x32xf32, #tpu.memory_space<vmem>>, vector<8x32xf32>
    %c0_34 = arith.constant 0 : index
    %c0_35 = arith.constant 0 : index
    %107 = vector.load %arg6[%c0_34, %c0_35] : memref<32x32xf32, #tpu.memory_space<vmem>>, vector<32x32xf32>
    %cst_36 = arith.constant dense<0.000000e+00> : vector<8x32xf32>
    %108 = tpu.matmul %106, %107, %cst_36 {dimension_numbers = #tpu.dot_dimension_numbers<[1], [0], [0], [1], [0, 0, 1, 1], [], []>} : vector<8x32xf32>, vector<32x32xf32>, vector<8x32xf32> -> vector<8x32xf32>
    %c0_37 = arith.constant 0 : index
    %c0_38 = arith.constant 0 : index
    %109 = vector.load %arg7[%c0_37, %c0_38] : memref<1x32xf32, #tpu.memory_space<vmem>>, vector<1x32xf32>
    %110 = vector.broadcast %109 : vector<1x32xf32> to vector<8x32xf32>
    %111 = arith.addf %108, %110 : vector<8x32xf32>
    %112 = arith.addf %7, %111 : vector<8x32xf32>
    %cst_39 = arith.constant dense<0.000000e+00> : vector<8xf32>
    %113 = vector.multi_reduction <add>, %112, %cst_39 [1] : vector<8x32xf32> to vector<8xf32>
    %114 = vector.shape_cast %113 : vector<8xf32> to vector<8x1xf32>
    %cst_40 = arith.constant 3.200000e+01 : f32
    %115 = vector.broadcast %cst_40 : f32 to vector<8x1xf32>
    %116 = arith.divf %114, %115 : vector<8x1xf32>
    %117 = vector.broadcast %116 : vector<8x1xf32> to vector<8x32xf32>
    %118 = arith.subf %112, %117 : vector<8x32xf32>
    %119 = arith.mulf %118, %118 : vector<8x32xf32>
    %cst_41 = arith.constant dense<0.000000e+00> : vector<8xf32>
    %120 = vector.multi_reduction <add>, %119, %cst_41 [1] : vector<8x32xf32> to vector<8xf32>
    %121 = vector.shape_cast %120 : vector<8xf32> to vector<8x1xf32>
    %cst_42 = arith.constant 3.200000e+01 : f32
    %122 = vector.broadcast %cst_42 : f32 to vector<8x1xf32>
    %123 = arith.divf %121, %122 : vector<8x1xf32>
    %124 = vector.broadcast %116 : vector<8x1xf32> to vector<8x32xf32>
    %125 = arith.subf %112, %124 : vector<8x32xf32>
    %cst_43 = arith.constant 9.99999997E-7 : f32
    %126 = vector.broadcast %cst_43 : f32 to vector<8x1xf32>
    %127 = arith.addf %123, %126 : vector<8x1xf32>
    %128 = math.rsqrt %127 : vector<8x1xf32>
    %129 = vector.broadcast %128 : vector<8x1xf32> to vector<8x32xf32>
    %130 = arith.mulf %125, %129 : vector<8x32xf32>
    %c0_44 = arith.constant 0 : index
    %c0_45 = arith.constant 0 : index
    %131 = vector.load %arg8[%c0_44, %c0_45] : memref<32x64xf32, #tpu.memory_space<vmem>>, vector<32x64xf32>
    %cst_46 = arith.constant dense<0.000000e+00> : vector<8x64xf32>
    %132 = tpu.matmul %130, %131, %cst_46 {dimension_numbers = #tpu.dot_dimension_numbers<[1], [0], [0], [1], [0, 0, 1, 1], [], []>} : vector<8x32xf32>, vector<32x64xf32>, vector<8x64xf32> -> vector<8x64xf32>
    %c0_47 = arith.constant 0 : index
    %c0_48 = arith.constant 0 : index
    %133 = vector.load %arg9[%c0_47, %c0_48] : memref<1x64xf32, #tpu.memory_space<vmem>>, vector<1x64xf32>
    %134 = vector.broadcast %133 : vector<1x64xf32> to vector<8x64xf32>
    %135 = arith.addf %132, %134 : vector<8x64xf32>
    %cst_49 = arith.constant 5.000000e-01 : f32
    %136 = vector.broadcast %cst_49 : f32 to vector<8x64xf32>
    %137 = arith.mulf %136, %135 : vector<8x64xf32>
    %cst_50 = arith.constant 0.707106769 : f32
    %138 = vector.broadcast %cst_50 : f32 to vector<8x64xf32>
    %139 = arith.mulf %135, %138 : vector<8x64xf32>
    %140 = math.erf %139 : vector<8x64xf32>
    %cst_51 = arith.constant 1.000000e+00 : f32
    %141 = vector.broadcast %cst_51 : f32 to vector<8x64xf32>
    %142 = arith.addf %141, %140 : vector<8x64xf32>
    %143 = arith.mulf %137, %142 : vector<8x64xf32>
    %c0_52 = arith.constant 0 : index
    %c0_53 = arith.constant 0 : index
    %144 = vector.load %arg10[%c0_52, %c0_53] : memref<64x32xf32, #tpu.memory_space<vmem>>, vector<64x32xf32>
    %cst_54 = arith.constant dense<0.000000e+00> : vector<8x32xf32>
    %145 = tpu.matmul %143, %144, %cst_54 {dimension_numbers = #tpu.dot_dimension_numbers<[1], [0], [0], [1], [0, 0, 1, 1], [], []>} : vector<8x64xf32>, vector<64x32xf32>, vector<8x32xf32> -> vector<8x32xf32>
    %c0_55 = arith.constant 0 : index
    %c0_56 = arith.constant 0 : index
    %146 = vector.load %arg11[%c0_55, %c0_56] : memref<1x32xf32, #tpu.memory_space<vmem>>, vector<1x32xf32>
    %147 = vector.broadcast %146 : vector<1x32xf32> to vector<8x32xf32>
    %148 = arith.addf %145, %147 : vector<8x32xf32>
    %149 = arith.addf %112, %148 : vector<8x32xf32>
    %c0_57 = arith.constant 0 : index
    %c0_58 = arith.constant 0 : index
    %c0_59 = arith.constant 0 : index
    %150 = vector.load %arg12[%c0_57, %c0_58, %c0_59] : memref<1x8x32xf32, #tpu.memory_space<vmem>>, vector<1x8x32xf32>
    %151 = vector.shape_cast %150 : vector<1x8x32xf32> to vector<8x32xf32>
    %152 = vector.shape_cast %149 : vector<8x32xf32> to vector<1x8x32xf32>
    tpu.vector_store %arg12[%c0_57, %c0_58, %c0_59], %152 {strides = array<i32>} : memref<1x8x32xf32, #tpu.memory_space<vmem>>, vector<1x8x32xf32>,
    return
  }
  func.func @transform_0(%arg0: i32, %arg1: i32) -> (i32, i32, i32) {
    %c0_i32 = arith.constant 0 : i32
    %c0_i32_0 = arith.constant 0 : i32
    %c0_i32_1 = arith.constant 0 : i32
    return %arg0, %c0_i32, %c0_i32_0 : i32, i32, i32
  }
  func.func @transform_1(%arg0: i32, %arg1: i32) -> (i32, i32, i32) {
    %c0_i32 = arith.constant 0 : i32
    %c0_i32_0 = arith.constant 0 : i32
    %c0_i32_1 = arith.constant 0 : i32
    return %arg0, %c0_i32, %c0_i32_0 : i32, i32, i32
  }
  func.func @transform_2(%arg0: i32, %arg1: i32) -> (i32, i32) {
    %c0_i32 = arith.constant 0 : i32
    %c0_i32_0 = arith.constant 0 : i32
    %c0_i32_1 = arith.constant 0 : i32
    return %c0_i32, %c0_i32_0 : i32, i32
  }
  func.func @transform_3(%arg0: i32, %arg1: i32) -> (i32, i32) {
    %c0_i32 = arith.constant 0 : i32
    %c0_i32_0 = arith.constant 0 : i32
    %c0_i32_1 = arith.constant 0 : i32
    return %c0_i32, %c0_i32_0 : i32, i32
  }
  func.func @transform_4(%arg0: i32, %arg1: i32) -> (i32, i32) {
    %c0_i32 = arith.constant 0 : i32
    %c0_i32_0 = arith.constant 0 : i32
    %c0_i32_1 = arith.constant 0 : i32
    return %c0_i32, %c0_i32_0 : i32, i32
  }
  func.func @transform_5(%arg0: i32, %arg1: i32) -> (i32, i32) {
    %c0_i32 = arith.constant 0 : i32
    %c0_i32_0 = arith.constant 0 : i32
    %c0_i32_1 = arith.constant 0 : i32
    return %c0_i32, %c0_i32_0 : i32, i32
  }
  func.func @transform_6(%arg0: i32, %arg1: i32) -> (i32, i32) {
    %c0_i32 = arith.constant 0 : i32
    %c0_i32_0 = arith.constant 0 : i32
    %c0_i32_1 = arith.constant 0 : i32
    return %c0_i32, %c0_i32_0 : i32, i32
  }
  func.func @transform_7(%arg0: i32, %arg1: i32) -> (i32, i32) {
    %c0_i32 = arith.constant 0 : i32
    %c0_i32_0 = arith.constant 0 : i32
    %c0_i32_1 = arith.constant 0 : i32
    return %c0_i32, %c0_i32_0 : i32, i32
  }
  func.func @transform_8(%arg0: i32, %arg1: i32) -> (i32, i32) {
    %c0_i32 = arith.constant 0 : i32
    %c0_i32_0 = arith.constant 0 : i32
    %c0_i32_1 = arith.constant 0 : i32
    return %c0_i32, %c0_i32_0 : i32, i32
  }
  func.func @transform_9(%arg0: i32, %arg1: i32) -> (i32, i32) {
    %c0_i32 = arith.constant 0 : i32
    %c0_i32_0 = arith.constant 0 : i32
    %c0_i32_1 = arith.constant 0 : i32
    return %c0_i32, %c0_i32_0 : i32, i32
  }
  func.func @transform_10(%arg0: i32, %arg1: i32) -> (i32, i32, i32) {
    %c0_i32 = arith.constant 0 : i32
    %c0_i32_0 = arith.constant 0 : i32
    return %arg0, %arg1, %c0_i32 : i32, i32, i32
  }
}

</mosaic_0001>

<llo_original>
// kernel: vit_block.1
$region0: #{vit_block.1}
  #allocation0 [shape = 'u32[]', space=smem, size = 0x4, offset = 0x4, fixed_abs, tag = 'smem constant byte address 0x4 - core index']
  #allocation1 [shape = 'u32[72,128]{1,0:T(1,128)}', space=vmem, size = 0x9000, scoped, tag = 'internal scratch']
  #allocation2 [shape = 'f32[16,96]{1,0:T(8,128)}', space=vmem, size = 0x2000, scoped, tag = 'scratch operand']
  #allocation3 [shape = 'f32[8,32]{1,0:T(8,128)}', space=vmem, size = 0x1000, scoped, tag = 'scratch operand']
  %s0 = inlined_call_operand.vmem [shape: f32[2,16,32], index: 0, kind: input, shape index: {}]
  %s1 = inlined_call_operand.vmem [shape: f32[2,1,16], index: 1, kind: input, shape index: {}]
  %s2 = inlined_call_operand.vmem [shape: f32[32,96], index: 2, kind: input, shape index: {}]
  %s3 = inlined_call_operand.vmem [shape: f32[1,96], index: 3, kind: input, shape index: {}]
  %s4 = inlined_call_operand.vmem [shape: f32[32,32], index: 4, kind: input, shape index: {}]
  %s5 = inlined_call_operand.vmem [shape: f32[1,32], index: 5, kind: input, shape index: {}]
  %s6 = inlined_call_operand.vmem [shape: f32[32,64], index: 6, kind: input, shape index: {}]
  %s7 = inlined_call_operand.vmem [shape: f32[1,64], index: 7, kind: input, shape index: {}]
  %s8 = inlined_call_operand.vmem [shape: f32[64,32], index: 8, kind: input, shape index: {}]
  %s9 = inlined_call_operand.vmem [shape: f32[1,32], index: 9, kind: input, shape index: {}]
  %s10 = inlined_call_operand.vmem [shape: f32[2,16,32], index: 10, kind: output, shape index: {}]
  %s11 = sld [smem:[#allocation0]]
  $region77: #{vit_block.1} parent=0
    _
  %s13 = ssub.s32 1, %s11
  %s14 = scalar_select 0, %s13, %s11
  loop: start=0, step=1, limit=6
  $region2: #{vit_block.1} parent=0 // loop_pre_header
    _
  $region3: #{vit_block.1} parent=0 // loop_header
    %s16 = sphi 0, %s20
    %p17 = scmp.ge.s32.totalorder %s16, 6
    %s23 = sphi 0, %s35
    %s24 = sphi 0, %s31
    %s25 = sphi 0, %s23
    %s26 = sphi 0, %s24
    %s27 = sphi 0, %s25
    %s28 = sphi 0, %s26
    %s38 = sphi 0, %s40
    %s41 = sphi 0, %s38
    %s42 = sphi 0, %s41
    %s58 = sphi 0, %s42
    %s64 = sphi 0, %s66
    %s67 = sphi 0, %s64
    %s68 = sphi 0, %s67
    %s84 = sphi 0, %s68
    %s88 = sphi 0, %s88
    %s90 = sphi 0, %s88
    %s91 = sphi 0, %s90
    %s105 = sphi 0, %s91
    %s109 = sphi 0, %s109
    %s111 = sphi 0, %s109
    %s112 = sphi 0, %s111
    %s126 = sphi 0, %s112
    %s130 = sphi 0, %s130
    %s132 = sphi 0, %s130
    %s133 = sphi 0, %s132
    %s147 = sphi 0, %s133
    %s151 = sphi 0, %s151
    %s153 = sphi 0, %s151
    %s154 = sphi 0, %s153
    %s168 = sphi 0, %s154
    %s172 = sphi 0, %s172
    %s174 = sphi 0, %s172
    %s175 = sphi 0, %s174
    %s189 = sphi 0, %s175
    %s193 = sphi 0, %s193
    %s195 = sphi 0, %s193
    %s196 = sphi 0, %s195
    %s210 = sphi 0, %s196
    %s214 = sphi 0, %s214
    %s216 = sphi 0, %s214
    %s217 = sphi 0, %s216
    %s231 = sphi 0, %s217
    %s235 = sphi 0, %s235
    %s237 = sphi 0, %s235
    %s238 = sphi 0, %s237
    %s252 = sphi 0, %s238
    %s260 = sphi 0, %s262
    %s263 = sphi 0, %s260
    %s264 = sphi 0, %s263
    %s280 = sphi 0, %s264
  $region4: #{vit_block.1} parent=0 // loop_header_branch
    %19 = sbr.rel (%p17) target = $region8
  $region5: #{vit_block.1} parent=0 // loop_body
    %s21 = ssub.s32 %s16, 1
    %s22 = ssub.s32 %s16, 2
    %s29 = sadd.s32 1, %s24
    %p30 = scmp.ge.s32.totalorder %s29, 2
    %s31 = scalar_select %p30, 0, %s29
    %s32 = sadd.s32 1, %s23
    %s33 = scalar_select %p30, %s32, %s23
    %p34 = scmp.ge.s32.totalorder %s33, 2
    %s35 = scalar_select %p34, 0, %s33
    %s36 = ssub.s32 %s23, %s35
    %p37 = scmp.eq.s32.totalorder %s36, 0
    %s39 = sadd.s32 %s38, 1
    %s40 = scalar_select %p37, %s38, %s39
    %p43 = pneg %p37
    %p44 = scmp.eq.s32.totalorder %s16, 3
    %p45 = por %p43, %p44
    %p46 = scmp.ne.s32.totalorder %s38, %s41
    %p47 = scmp.eq.s32.totalorder %s16, 0
    %p48 = por %p46, %p47
    %p49 = scmp.ne.s32.totalorder %s38, %s41
    %p50 = scmp.eq.s32.totalorder %s21, 3
    %p51 = por %p49, %p50
    %p52 = scmp.ne.s32.totalorder %s41, %s42
    %p53 = scmp.eq.s32.totalorder %s21, 0
    %p54 = por %p52, %p53
    %p55 = scmp.ne.s32.totalorder %s41, %s42
    %p56 = scmp.eq.s32.totalorder %s22, 3
    %p57 = por %p55, %p56
    %p59 = scmp.ne.s32.totalorder %s42, %s58
    %p60 = scmp.eq.s32.totalorder %s22, 0
    %p61 = por %p59, %p60
    %s62 = ssub.s32 %s23, %s35
    %p63 = scmp.eq.s32.totalorder %s62, 0
    %s65 = sadd.s32 %s64, 1
    %s66 = scalar_select %p63, %s64, %s65
    %p69 = pneg %p63
    %p70 = scmp.eq.s32.totalorder %s16, 3
    %p71 = por %p69, %p70
    %p72 = scmp.ne.s32.totalorder %s64, %s67
    %p73 = scmp.eq.s32.totalorder %s16, 0
    %p74 = por %p72, %p73
    %p75 = scmp.ne.s32.totalorder %s64, %s67
    %p76 = scmp.eq.s32.totalorder %s21, 3
    %p77 = por %p75, %p76
    %p78 = scmp.ne.s32.totalorder %s67, %s68
    %p79 = scmp.eq.s32.totalorder %s21, 0
    %p80 = por %p78, %p79
    %p81 = scmp.ne.s32.totalorder %s67, %s68
    %p82 = scmp.eq.s32.totalorder %s22, 3
    %p83 = por %p81, %p82
    %p85 = scmp.ne.s32.totalorder %s68, %s84
    %p86 = scmp.eq.s32.totalorder %s22, 0
    %p87 = por %p85, %p86
    %s89 = sadd.s32 %s88, 1
    %p92 = scmp.eq.s32.totalorder %s16, 3
    %p93 = scmp.ne.s32.totalorder %s88, %s90
    %p94 = scmp.eq.s32.totalorder %s16, 0
    %p95 = por %p93, %p94
    %p96 = scmp.ne.s32.totalorder %s88, %s90
    %p97 = scmp.eq.s32.totalorder %s21, 3
    %p98 = por %p96, %p97
    %p99 = scmp.ne.s32.totalorder %s90, %s91
    %p100 = scmp.eq.s32.totalorder %s21, 0
    %p101 = por %p99, %p100
    %p102 = scmp.ne.s32.totalorder %s90, %s91
    %p103 = scmp.eq.s32.totalorder %s22, 3
    %p104 = por %p102, %p103
    %p106 = scmp.ne.s32.totalorder %s91, %s105
    %p107 = scmp.eq.s32.totalorder %s22, 0
    %p108 = por %p106, %p107
    %s110 = sadd.s32 %s109, 1
    %p113 = scmp.eq.s32.totalorder %s16, 3
    %p114 = scmp.ne.s32.totalorder %s109, %s111
    %p115 = scmp.eq.s32.totalorder %s16, 0
    %p116 = por %p114, %p115
    %p117 = scmp.ne.s32.totalorder %s109, %s111
    %p118 = scmp.eq.s32.totalorder %s21, 3
    %p119 = por %p117, %p118
    %p120 = scmp.ne.s32.totalorder %s111, %s112
    %p121 = scmp.eq.s32.totalorder %s21, 0
    %p122 = por %p120, %p121
    %p123 = scmp.ne.s32.totalorder %s111, %s112
    %p124 = scmp.eq.s32.totalorder %s22, 3
    %p125 = por %p123, %p124
    %p127 = scmp.ne.s32.totalorder %s112, %s126
    %p128 = scmp.eq.s32.totalorder %s22, 0
    %p129 = por %p127, %p128
    %s131 = sadd.s32 %s130, 1
    %p134 = scmp.eq.s32.totalorder %s16, 3
    %p135 = scmp.ne.s32.totalorder %s130, %s132
    %p136 = scmp.eq.s32.totalorder %s16, 0
    %p137 = por %p135, %p136
    %p138 = scmp.ne.s32.totalorder %s130, %s132
    %p139 = scmp.eq.s32.totalorder %s21, 3
    %p140 = por %p138, %p139
    %p141 = scmp.ne.s32.totalorder %s132, %s133
    %p142 = scmp.eq.s32.totalorder %s21, 0
    %p143 = por %p141, %p142
    %p144 = scmp.ne.s32.totalorder %s132, %s133
    %p145 = scmp.eq.s32.totalorder %s22, 3
    %p146 = por %p144, %p145
    %p148 = scmp.ne.s32.totalorder %s133, %s147
    %p149 = scmp.eq.s32.totalorder %s22, 0
    %p150 = por %p148, %p149
    %s152 = sadd.s32 %s151, 1
    %p155 = scmp.eq.s32.totalorder %s16, 3
    %p156 = scmp.ne.s32.totalorder %s151, %s153
    %p157 = scmp.eq.s32.totalorder %s16, 0
    %p158 = por %p156, %p157
    %p159 = scmp.ne.s32.totalorder %s151, %s153
    %p160 = scmp.eq.s32.totalorder %s21, 3
    %p161 = por %p159, %p160
    %p162 = scmp.ne.s32.totalorder %s153, %s154
    %p163 = scmp.eq.s32.totalorder %s21, 0
    %p164 = por %p162, %p163
    %p165 = scmp.ne.s32.totalorder %s153, %s154
    %p166 = scmp.eq.s32.totalorder %s22, 3
    %p167 = por %p165, %p166
    %p169 = scmp.ne.s32.totalorder %s154, %s168
    %p170 = scmp.eq.s32.totalorder %s22, 0
    %p171 = por %p169, %p170
    %s173 = sadd.s32 %s172, 1
    %p176 = scmp.eq.s32.totalorder %s16, 3
    %p177 = scmp.ne.s32.totalorder %s172, %s174
    %p178 = scmp.eq.s32.totalorder %s16, 0
    %p179 = por %p177, %p178
    %p180 = scmp.ne.s32.totalorder %s172, %s174
    %p181 = scmp.eq.s32.totalorder %s21, 3
    %p182 = por %p180, %p181
    %p183 = scmp.ne.s32.totalorder %s174, %s175
    %p184 = scmp.eq.s32.totalorder %s21, 0
    %p185 = por %p183, %p184
    %p186 = scmp.ne.s32.totalorder %s174, %s175
    %p187 = scmp.eq.s32.totalorder %s22, 3
    %p188 = por %p186, %p187
    %p190 = scmp.ne.s32.totalorder %s175, %s189
    %p191 = scmp.eq.s32.totalorder %s22, 0
    %p192 = por %p190, %p191
    %s194 = sadd.s32 %s193, 1
    %p197 = scmp.eq.s32.totalorder %s16, 3
    %p198 = scmp.ne.s32.totalorder %s193, %s195
    %p199 = scmp.eq.s32.totalorder %s16, 0
    %p200 = por %p198, %p199
    %p201 = scmp.ne.s32.totalorder %s193, %s195
    %p202 = scmp.eq.s32.totalorder %s21, 3
    %p203 = por %p201, %p202
    %p204 = scmp.ne.s32.totalorder %s195, %s196
    %p205 = scmp.eq.s32.totalorder %s21, 0
    %p206 = por %p204, %p205
    %p207 = scmp.ne.s32.totalorder %s195, %s196
    %p208 = scmp.eq.s32.totalorder %s22, 3
    %p209 = por %p207, %p208
    %p211 = scmp.ne.s32.totalorder %s196, %s210
    %p212 = scmp.eq.s32.totalorder %s22, 0
    %p213 = por %p211, %p212
    %s215 = sadd.s32 %s214, 1
    %p218 = scmp.eq.s32.totalorder %s16, 3
    %p219 = scmp.ne.s32.totalorder %s214, %s216
    %p220 = scmp.eq.s32.totalorder %s16, 0
    %p221 = por %p219, %p220
    %p222 = scmp.ne.s32.totalorder %s214, %s216
    %p223 = scmp.eq.s32.totalorder %s21, 3
    %p224 = por %p222, %p223
    %p225 = scmp.ne.s32.totalorder %s216, %s217
    %p226 = scmp.eq.s32.totalorder %s21, 0
    %p227 = por %p225, %p226
    %p228 = scmp.ne.s32.totalorder %s216, %s217
    %p229 = scmp.eq.s32.totalorder %s22, 3
    %p230 = por %p228, %p229
    %p232 = scmp.ne.s32.totalorder %s217, %s231
    %p233 = scmp.eq.s32.totalorder %s22, 0
    %p234 = por %p232, %p233
    %s236 = sadd.s32 %s235, 1
    %p239 = scmp.eq.s32.totalorder %s16, 3
    %p240 = scmp.ne.s32.totalorder %s235, %s237
    %p241 = scmp.eq.s32.totalorder %s16, 0
    %p242 = por %p240, %p241
    %p243 = scmp.ne.s32.totalorder %s235, %s237
    %p244 = scmp.eq.s32.totalorder %s21, 3
    %p245 = por %p243, %p244
    %p246 = scmp.ne.s32.totalorder %s237, %s238
    %p247 = scmp.eq.s32.totalorder %s21, 0
    %p248 = por %p246, %p247
    %p249 = scmp.ne.s32.totalorder %s237, %s238
    %p250 = scmp.eq.s32.totalorder %s22, 3
    %p251 = por %p249, %p250
    %p253 = scmp.ne.s32.totalorder %s238, %s252
    %p254 = scmp.eq.s32.totalorder %s22, 0
    %p255 = por %p253, %p254
    %s256 = ssub.s32 %s23, %s35
    %s257 = ssub.s32 %s24, %s31
    %s258 = sor.u32 %s256, %s257
    %p259 = scmp.eq.s32.totalorder %s258, 0
    %s261 = sadd.s32 %s260, 1
    %s262 = scalar_select %p259, %s260, %s261
    %p265 = pneg %p259
    %p266 = scmp.eq.s32.totalorder %s16, 3
    %p267 = por %p265, %p266
    %p268 = scmp.ne.s32.totalorder %s260, %s263
    %p269 = scmp.eq.s32.totalorder %s16, 0
    %p270 = por %p268, %p269
    %p271 = scmp.ne.s32.totalorder %s260, %s263
    %p272 = scmp.eq.s32.totalorder %s21, 3
    %p273 = por %p271, %p272
    %p274 = scmp.ne.s32.totalorder %s263, %s264
    %p275 = scmp.eq.s32.totalorder %s21, 0
    %p276 = por %p274, %p275
    %p277 = scmp.ne.s32.totalorder %s263, %s264
    %p278 = scmp.eq.s32.totalorder %s22, 3
    %p279 = por %p277, %p278
    %p281 = scmp.ne.s32.totalorder %s264, %s280
    %p282 = scmp.eq.s32.totalorder %s22, 0
    %p283 = por %p281, %p282
    %p284 = scmp.le.s32.totalorder 1, %s16
    %p285 = scmp.lt.s32.totalorder %s16, 5
    %p286 = pnand %p284, %p285
    %p287 = pneg %p286
    // Predicated region
    $region9: #{vit_block.1} parent=5 // pred_check
      _
    $region10: #{vit_block.1} parent=5 // pred_check_branch
      %289 = sbr.rel (%p286) target = $region12
    $region11: #{vit_block.1} parent=5 // pred_region
      %s290 = ssub.s32 %s16, 1
      // Predicated region
      $region13: #{vit_block.1} parent=11 // pred_check
        %p291 = pneg %p101
      $region14: #{vit_block.1} parent=11 // pred_check_branch
        %293 = sbr.rel (%p291) target = $region16
      $region15: #{vit_block.1} parent=11 // pred_region
        _
      $region16: #{vit_block.1} parent=11 // pred_fallthru
        _
      // Predicated region
      $region17: #{vit_block.1} parent=11 // pred_check
        %p294 = pneg %p122
      $region18: #{vit_block.1} parent=11 // pred_check_branch
        %296 = sbr.rel (%p294) target = $region20
      $region19: #{vit_block.1} parent=11 // pred_region
        _
      $region20: #{vit_block.1} parent=11 // pred_fallthru
        _
      // Predicated region
      $region21: #{vit_block.1} parent=11 // pred_check
        %p297 = pneg %p143
      $region22: #{vit_block.1} parent=11 // pred_check_branch
        %299 = sbr.rel (%p297) target = $region24
      $region23: #{vit_block.1} parent=11 // pred_region
        _
      $region24: #{vit_block.1} parent=11 // pred_fallthru
        _
      // Predicated region
      $region25: #{vit_block.1} parent=11 // pred_check
        %p300 = pneg %p164
      $region26: #{vit_block.1} parent=11 // pred_check_branch
        %302 = sbr.rel (%p300) target = $region28
      $region27: #{vit_block.1} parent=11 // pred_region
        _
      $region28: #{vit_block.1} parent=11 // pred_fallthru
        _
      // Predicated region
      $region29: #{vit_block.1} parent=11 // pred_check
        %p303 = pneg %p185
      $region30: #{vit_block.1} parent=11 // pred_check_branch
        %305 = sbr.rel (%p303) target = $region32
      $region31: #{vit_block.1} parent=11 // pred_region
        _
      $region32: #{vit_block.1} parent=11 // pred_fallthru
        _
      // Predicated region
      $region33: #{vit_block.1} parent=11 // pred_check
        %p306 = pneg %p206
      $region34: #{vit_block.1} parent=11 // pred_check_branch
        %308 = sbr.rel (%p306) target = $region36
      $region35: #{vit_block.1} parent=11 // pred_region
        _
      $region36: #{vit_block.1} parent=11 // pred_fallthru
        _
      // Predicated region
      $region37: #{vit_block.1} parent=11 // pred_check
        %p309 = pneg %p227
      $region38: #{vit_block.1} parent=11 // pred_check_branch
        %311 = sbr.rel (%p309) target = $region40
      $region39: #{vit_block.1} parent=11 // pred_region
        _
      $region40: #{vit_block.1} parent=11 // pred_fallthru
        _
      // Predicated region
      $region41: #{vit_block.1} parent=11 // pred_check
        %p312 = pneg %p248
      $region42: #{vit_block.1} parent=11 // pred_check_branch
        %314 = sbr.rel (%p312) target = $region44
      $region43: #{vit_block.1} parent=11 // pred_region
        _
      $region44: #{vit_block.1} parent=11 // pred_fallthru
        _
    $region12: #{vit_block.1} parent=5 // pred_fallthru
      _
    %p315 = scmp.lt.s32.totalorder %s16, 4
    // Predicated region
    $region45: #{vit_block.1} parent=5 // pred_check
      %p316 = pneg %p315
    $region46: #{vit_block.1} parent=5 // pred_check_branch
      %318 = sbr.rel (%p316) target = $region48
    $region47: #{vit_block.1} parent=5 // pred_region
      // Predicated region
      $region49: #{vit_block.1} parent=47 // pred_check
        %p319 = pneg %p48
      $region50: #{vit_block.1} parent=47 // pred_check_branch
        %321 = sbr.rel (%p319) target = $region52
      $region51: #{vit_block.1} parent=47 // pred_region
        %p322 = scmp.lt.s32.totalorder %s23, 1
        %s323 = scalar_select %p322, %s23, 1
        %s324 = smul.addr %s323, 2
        %s325 = smul.addr %s324, 8
        %s326 = scalar_lea.vmem %s0, %s325
      $region52: #{vit_block.1} parent=47 // pred_fallthru
        _
      // Predicated region
      $region53: #{vit_block.1} parent=47 // pred_check
        %p327 = pneg %p74
      $region54: #{vit_block.1} parent=47 // pred_check_branch
        %329 = sbr.rel (%p327) target = $region56
      $region55: #{vit_block.1} parent=47 // pred_region
        %p330 = scmp.lt.s32.totalorder %s23, 1
        %s331 = scalar_select %p330, %s23, 1
        %s332 = scalar_lea.vmem %s1, %s331
      $region56: #{vit_block.1} parent=47 // pred_fallthru
        _
    $region48: #{vit_block.1} parent=5 // pred_fallthru
      _
    %p333 = scmp.le.s32.totalorder 1, %s16
    %p334 = scmp.lt.s32.totalorder %s16, 5
    %p335 = pnand %p333, %p334
    %p336 = pneg %p335
    // Predicated region
    $region57: #{vit_block.1} parent=5 // pred_check
      _
    $region58: #{vit_block.1} parent=5 // pred_check_branch
      %338 = sbr.rel (%p335) target = $region60
    $region59: #{vit_block.1} parent=5 // pred_region
      %s339 = ssub.s32 %s16, 1
      %p340 = scmp.lt.s32.totalorder %s25, 1
      %s341 = scalar_select %p340, %s25, 1
      %s342 = smul.addr %s341, 2
      %s343 = smul.addr %s342, 8
      %s344 = scalar_lea.vmem %s0, %s343
      %p345 = pneg %p54
      %p346 = pneg %p51
      %p347 = scmp.lt.s32.totalorder %s25, 1
      %s348 = scalar_select %p347, %s25, 1
      %s349 = scalar_lea.vmem %s1, %s348
      %p350 = pneg %p80
      %p351 = pneg %p77
      %p352 = pneg %p101
      %p353 = pneg %p98
      %p354 = pneg %p122
      %p355 = pneg %p119
      %p356 = pneg %p143
      %p357 = pneg %p140
      %p358 = pneg %p164
      %p359 = pneg %p161
      %p360 = pneg %p185
      %p361 = pneg %p182
      %p362 = pneg %p206
      %p363 = pneg %p203
      %p364 = pneg %p227
      %p365 = pneg %p224
      %p366 = pneg %p248
      %p367 = pneg %p245
      %p368 = pneg %p276
      %p369 = pneg %p273
      %p370 = scmp.lt.s32.totalorder %s25, 1
      %s371 = scalar_select %p370, %s25, 1
      %p372 = scmp.lt.s32.totalorder %s26, 1
      %s373 = scalar_select %p372, %s26, 1
      %s374 = smul.addr %s371, 2
      %s375 = sadd.s32 %s373, %s374
      %s376 = smul.addr %s375, 8
      %s377 = scalar_lea.vmem %s10, %s376
      %p378 = scmp.lt.s32.totalorder %s25, 1
      %s379 = scalar_select %p378, %s25, 1
      %s380 = smul.addr %s379, 2
      %s381 = smul.addr %s380, 8
      %s382 = scalar_lea.vmem %s0, %s381
      %p383 = scmp.lt.s32.totalorder %s25, 1
      %s384 = scalar_select %p383, %s25, 1
      %s385 = scalar_lea.vmem %s1, %s384
      %p386 = scmp.lt.s32.totalorder %s25, 1
      %s387 = scalar_select %p386, %s25, 1
      %p388 = scmp.lt.s32.totalorder %s26, 1
      %s389 = scalar_select %p388, %s26, 1
      %s390 = smul.addr %s387, 2
      %s391 = sadd.s32 %s389, %s390
      %s392 = smul.addr %s391, 8
      %s393 = scalar_lea.vmem %s10, %s392
      %p394 = scmp.eq.s32.totalorder %s26, 0
      // Predicated region
      $region61: #{vit_block.1} parent=59 // pred_check
        %p395 = pneg %p394
      $region62: #{vit_block.1} parent=59 // pred_check_branch
        %397 = sbr.rel (%p395) target = $region64
      $region63: #{vit_block.1} parent=59 // pred_region
        %v398 = vld [vmem:[%s382] sm:$0xff]
        %v399 = vld [vmem:[%s382 + $0x8] sm:$0xff]
        %vm400 = vcmask 261120
        %v401 = vsel %vm400, %v398, 0.0
        %402 = vadd.xlane.f32.xlu0 %v401
        %v403 = vpop.xlane.xlu0 %402
        %v404 = vsel %vm400, %v399, 0.0
        %405 = vadd.xlane.f32.xlu0 %v404
        %v406 = vpop.xlane.xlu0 %405
        %v407 = vrcp.pop 32.0
        %v408 = vmul.f32 32.0, %v407
        %v409 = vsub.f32 1.0, %v408
        %v410 = vmul.f32 %v407, %v409
        %v411 = vadd.f32 %v407, %v410
        %vm412 = vweird.f32 %v407
        %v413 = vsel %vm412, %v407, %v411
        %v414 = vmul.f32 %v403, %v413
        %v415 = vmul.f32 %v406, %v413
        %v416 = vsub.f32 %v398, %v414
        %v417 = vsub.f32 %v399, %v415
        %v418 = vmul.f32 %v416, %v416
        %v419 = vmul.f32 %v417, %v417
        %v420 = vsel %vm400, %v418, 0.0
        %421 = vadd.xlane.f32.xlu0 %v420
        %v422 = vpop.xlane.xlu0 %421
        %v423 = vsel %vm400, %v419, 0.0
        %424 = vadd.xlane.f32.xlu0 %v423
        %v425 = vpop.xlane.xlu0 %424
        %v426 = vmul.f32 %v422, %v413
        %v427 = vmul.f32 %v425, %v413
        %v428 = vadd.f32 %v426, 1e-06
        %v429 = vadd.f32 %v427, 1e-06
        %v430 = vrsqrt.pop %v428
        %v431 = vmul.f32 %v430, %v428
        %v432 = vmul.f32 %v431, %v430
        %v433 = vmul.f32 0.5, %v432
        %v434 = vsub.f32 1.5, %v433
        %v435 = vmul.f32 %v430, %v434
        %vm436 = vweird.f32 %v428
        %vm437 = vweird.f32 %v430
        %vm438 = vmor %vm436, %vm437
        %v439 = vsel %vm438, %v430, %v435
        %v440 = vrsqrt.pop %v429
        %v441 = vmul.f32 %v440, %v429
        %v442 = vmul.f32 %v441, %v440
        %v443 = vmul.f32 0.5, %v442
        %v444 = vsub.f32 1.5, %v443
        %v445 = vmul.f32 %v440, %v444
        %vm446 = vweird.f32 %v429
        %vm447 = vweird.f32 %v440
        %vm448 = vmor %vm446, %vm447
        %v449 = vsel %vm448, %v440, %v445
        %v450 = vmul.f32 %v416, %v439
        %v451 = vmul.f32 %v417, %v449
        %v452 = vld [vmem:[%s2] sm:$0xff]
        %v453 = vld [vmem:[%s2 + $0x8] sm:$0xff]
        %v454 = vld [vmem:[%s2 + $0x10] sm:$0xff]
        %v455 = vld [vmem:[%s2 + $0x18] sm:$0xff]
        %v456 = vld [vmem:[%s3] sm:$0x1]
        %v458 = vperm.slane %v456, 0
        %v461 = vsel %vm400, %v450, 0
        %v464 = vsel %vm400, %v451, 0
        %466 = vmatpush.msra.mxu0 0.0
        %467 = vmatpush.msra.mxu0 0.0
        %468 = vmatpush.msra.mxu0 0.0
        %469 = vmatpush.msra.mxu0 0.0
        %470 = vmatpush.msra.mxu0 0.0
        %471 = vmatpush.msra.mxu0 0.0
        %472 = vmatpush.msra.mxu0 0.0
        %473 = vmatpush.msra.mxu0 0.0
        %474 = vmatpush.msra.mxu0 0.0
        %475 = vmatpush.msra.mxu0 0.0
        %476 = vmatpush.msra.mxu0 0.0
        %477 = vmatpush.msra.mxu0 0.0
        %478 = vmatpush.msra.mxu0 %v455
        %479 = vmatpush.msra.mxu0 %v454
        %480 = vmatpush.msra.mxu0 %v453
        %481 = vmatpush.msra.mxu0 %v452
        %482 = vmatmul.f32.gmra.mxu0 %v461
        %v483 = vpop.f32.mrf.mxu0
        %v484 = vadd.f32 %v458, %v483
        %485 = vmatmul.f32.gmra.mxu0 %v464
        %v486 = vpop.f32.mrf.mxu0
        %v487 = vadd.f32 %v458, %v486
        %488 = vdwg.mxu0
        %vm489 = vcmask 785408
        %490 = vst.msk [vmem:[#allocation2] sm:$0xff] %vm489, %v484
        %491 = vst.msk [vmem:[#allocation2 + $0x8] sm:$0xff] %vm489, %v487
      $region64: #{vit_block.1} parent=59 // pred_fallthru
        _
      %s492 = smul.u32 %s26, 8
      %s493 = scalar_lea.vmem %s382, %s492
      %v494 = vld [vmem:[%s493] sm:$0xff]
      %s495 = scalar_lea.vmem [#allocation2], %s492
      %v496 = vld [vmem:[%s495] sm:$0xff]
      %v497 = vld [vmem:[#allocation2] sm:$0xff]
      %v498 = vld [vmem:[#allocation2 + $0x8] sm:$0xff]
      %v499 = vld [vmem:[%s385] sm:$0x1]
      %v501 = vperm.slane %v499, 0
      %505 = vrot.lane.b32.xlu0 %v497, 96
      %v506 = vpop.permute.xlu0 %505
      %507 = vrot.lane.b32.xlu0 %v498, 96
      %v508 = vpop.permute.xlu0 %507
      %vm509 = vcmask 64512
      %v511 = vsel %vm509, %v496, 0
      %v513 = vsel %vm509, %v506, 0
      %v515 = vsel %vm509, %v508, 0
      %517 = vmatpush.xpose.msra.mxu0 0.0
      %518 = vmatpush.xpose.msra.mxu0 0.0
      %519 = vmatpush.xpose.msra.mxu0 0.0
      %520 = vmatpush.xpose.msra.mxu0 0.0
      %521 = vmatpush.xpose.msra.mxu0 0.0
      %522 = vmatpush.xpose.msra.mxu0 0.0
      %523 = vmatpush.xpose.msra.mxu0 0.0
      %524 = vmatpush.xpose.msra.mxu0 0.0
      %525 = vmatpush.xpose.msra.mxu0 0.0
      %526 = vmatpush.xpose.msra.mxu0 0.0
      %527 = vmatpush.xpose.msra.mxu0 0.0
      %528 = vmatpush.xpose.msra.mxu0 0.0
      %529 = vmatpush.xpose.msra.mxu0 0.0
      %530 = vmatpush.xpose.msra.mxu0 0.0
      %531 = vmatpush.xpose.msra.mxu0 %v515
      %532 = vmatpush.xpose.msra.mxu0 %v513
      %533 = vmatmul.f32.gmra.mxu0 %v511
      %v534 = vpop.f32.mrf.mxu0
      %v535 = vadd.f32 %v501, %v534
      %536 = vdwg.mxu0
      %vm537 = vcmask 130048
      %v538 = vsel %vm537, %v535, -inf
      %539 = vmax.xlane.f32.xlu0 %v538
      %v540 = vpop.xlane.xlu0 %539
      %v541 = vsub.f32 %v535, %v540
      %v542 = vmul.f32 %v541, 1.442695
      %v543 = vpow.pop %v542
      %v544 = vsel %vm537, %v543, 0.0
      %545 = vadd.xlane.f32.xlu0 %v544
      %v546 = vpop.xlane.xlu0 %545
      %v547 = vrcp.pop %v546
      %v548 = vmul.f32 %v546, %v547
      %v549 = vsub.f32 2.0, %v548
      %v550 = vmul.f32 %v547, %v549
      %551 = vrot.lane.b32.xlu0 %v497, 64
      %v552 = vpop.permute.xlu0 %551
      %553 = vrot.lane.b32.xlu0 %v498, 64
      %v554 = vpop.permute.xlu0 %553
      %v558 = vsel %vm537, %v543, 0
      %560 = vmatpush.msra.mxu0 0.0
      %561 = vmatpush.msra.mxu0 0.0
      %562 = vmatpush.msra.mxu0 0.0
      %563 = vmatpush.msra.mxu0 0.0
      %564 = vmatpush.msra.mxu0 0.0
      %565 = vmatpush.msra.mxu0 0.0
      %566 = vmatpush.msra.mxu0 0.0
      %567 = vmatpush.msra.mxu0 0.0
      %568 = vmatpush.msra.mxu0 0.0
      %569 = vmatpush.msra.mxu0 0.0
      %570 = vmatpush.msra.mxu0 0.0
      %571 = vmatpush.msra.mxu0 0.0
      %572 = vmatpush.msra.mxu0 0.0
      %573 = vmatpush.msra.mxu0 0.0
      %574 = vmatpush.msra.mxu0 %v554
      %575 = vmatpush.msra.mxu0 %v552
      %576 = vmatmul.f32.gmra.mxu0 %v558
      %v577 = vpop.f32.mrf.mxu0
      %v578 = vadd.f32 0.0, %v577
      %579 = vdwg.mxu0
      %v580 = vmul.f32 %v578, %v550
      %581 = vst.msk [vmem:[#allocation3] sm:$0xff] %vm509, %v580
      %582 = vrot.lane.b32.xlu0 %v496, 120
      %v583 = vpop.permute.xlu0 %582
      %584 = vrot.lane.b32.xlu0 %v497, 88
      %v585 = vpop.permute.xlu0 %584
      %586 = vrot.lane.b32.xlu0 %v498, 88
      %v587 = vpop.permute.xlu0 %586
      %v588 = vsel %vm509, %v583, 0
      %v590 = vsel %vm509, %v585, 0
      %v592 = vsel %vm509, %v587, 0
      %594 = vmatpush.xpose.msra.mxu0 0.0
      %595 = vmatpush.xpose.msra.mxu0 0.0
      %596 = vmatpush.xpose.msra.mxu0 0.0
      %597 = vmatpush.xpose.msra.mxu0 0.0
      %598 = vmatpush.xpose.msra.mxu0 0.0
      %599 = vmatpush.xpose.msra.mxu0 0.0
      %600 = vmatpush.xpose.msra.mxu0 0.0
      %601 = vmatpush.xpose.msra.mxu0 0.0
      %602 = vmatpush.xpose.msra.mxu0 0.0
      %603 = vmatpush.xpose.msra.mxu0 0.0
      %604 = vmatpush.xpose.msra.mxu0 0.0
      %605 = vmatpush.xpose.msra.mxu0 0.0
      %606 = vmatpush.xpose.msra.mxu0 0.0
      %607 = vmatpush.xpose.msra.mxu0 0.0
      %608 = vmatpush.xpose.msra.mxu0 %v592
      %609 = vmatpush.xpose.msra.mxu0 %v590
      %610 = vmatmul.f32.gmra.mxu0 %v588
      %v611 = vpop.f32.mrf.mxu0
      %v612 = vadd.f32 %v501, %v611
      %613 = vdwg.mxu0
      %v614 = vsel %vm537, %v612, -inf
      %615 = vmax.xlane.f32.xlu0 %v614
      %v616 = vpop.xlane.xlu0 %615
      %v617 = vsub.f32 %v612, %v616
      %v618 = vmul.f32 %v617, 1.442695
      %v619 = vpow.pop %v618
      %v620 = vsel %vm537, %v619, 0.0
      %621 = vadd.xlane.f32.xlu0 %v620
      %v622 = vpop.xlane.xlu0 %621
      %v623 = vrcp.pop %v622
      %v624 = vmul.f32 %v622, %v623
      %v625 = vsub.f32 2.0, %v624
      %v626 = vmul.f32 %v623, %v625
      %627 = vrot.lane.b32.xlu0 %v497, 56
      %v628 = vpop.permute.xlu0 %627
      %629 = vrot.lane.b32.xlu0 %v498, 56
      %v630 = vpop.permute.xlu0 %629
      %v634 = vsel %vm537, %v619, 0
      %636 = vmatpush.msra.mxu0 0.0
      %637 = vmatpush.msra.mxu0 0.0
      %638 = vmatpush.msra.mxu0 0.0
      %639 = vmatpush.msra.mxu0 0.0
      %640 = vmatpush.msra.mxu0 0.0
      %641 = vmatpush.msra.mxu0 0.0
      %642 = vmatpush.msra.mxu0 0.0
      %643 = vmatpush.msra.mxu0 0.0
      %644 = vmatpush.msra.mxu0 0.0
      %645 = vmatpush.msra.mxu0 0.0
      %646 = vmatpush.msra.mxu0 0.0
      %647 = vmatpush.msra.mxu0 0.0
      %648 = vmatpush.msra.mxu0 0.0
      %649 = vmatpush.msra.mxu0 0.0
      %650 = vmatpush.msra.mxu0 %v630
      %651 = vmatpush.msra.mxu0 %v628
      %652 = vmatmul.f32.gmra.mxu0 %v634
      %v653 = vpop.f32.mrf.mxu0
      %v654 = vadd.f32 0.0, %v653
      %655 = vdwg.mxu0
      %v656 = vmul.f32 %v654, %v626
      %658 = vrot.lane.b32.xlu0 %v656, 8
      %v659 = vpop.permute.xlu0 %658
      %vm661 = vcmask 130112
      %662 = vst.msk [vmem:[#allocation3] sm:$0xff] %vm661, %v659
      %663 = vrot.lane.b32.xlu0 %v496, 112
      %v664 = vpop.permute.xlu0 %663
      %665 = vrot.lane.b32.xlu0 %v497, 80
      %v666 = vpop.permute.xlu0 %665
      %667 = vrot.lane.b32.xlu0 %v498, 80
      %v668 = vpop.permute.xlu0 %667
      %v669 = vsel %vm509, %v664, 0
      %v671 = vsel %vm509, %v666, 0
      %v673 = vsel %vm509, %v668, 0
      %675 = vmatpush.xpose.msra.mxu0 0.0
      %676 = vmatpush.xpose.msra.mxu0 0.0
      %677 = vmatpush.xpose.msra.mxu0 0.0
      %678 = vmatpush.xpose.msra.mxu0 0.0
      %679 = vmatpush.xpose.msra.mxu0 0.0
      %680 = vmatpush.xpose.msra.mxu0 0.0
      %681 = vmatpush.xpose.msra.mxu0 0.0
      %682 = vmatpush.xpose.msra.mxu0 0.0
      %683 = vmatpush.xpose.msra.mxu0 0.0
      %684 = vmatpush.xpose.msra.mxu0 0.0
      %685 = vmatpush.xpose.msra.mxu0 0.0
      %686 = vmatpush.xpose.msra.mxu0 0.0
      %687 = vmatpush.xpose.msra.mxu0 0.0
      %688 = vmatpush.xpose.msra.mxu0 0.0
      %689 = vmatpush.xpose.msra.mxu0 %v673
      %690 = vmatpush.xpose.msra.mxu0 %v671
      %691 = vmatmul.f32.gmra.mxu0 %v669
      %v692 = vpop.f32.mrf.mxu0
      %v693 = vadd.f32 %v501, %v692
      %694 = vdwg.mxu0
      %v695 = vsel %vm537, %v693, -inf
      %696 = vmax.xlane.f32.xlu0 %v695
      %v697 = vpop.xlane.xlu0 %696
      %v698 = vsub.f32 %v693, %v697
      %v699 = vmul.f32 %v698, 1.442695
      %v700 = vpow.pop %v699
      %v701 = vsel %vm537, %v700, 0.0
      %702 = vadd.xlane.f32.xlu0 %v701
      %v703 = vpop.xlane.xlu0 %702
      %v704 = vrcp.pop %v703
      %v705 = vmul.f32 %v703, %v704
      %v706 = vsub.f32 2.0, %v705
      %v707 = vmul.f32 %v704, %v706
      %708 = vrot.lane.b32.xlu0 %v497, 48
      %v709 = vpop.permute.xlu0 %708
      %710 = vrot.lane.b32.xlu0 %v498, 48
      %v711 = vpop.permute.xlu0 %710
      %v715 = vsel %vm537, %v700, 0
      %717 = vmatpush.msra.mxu0 0.0
      %718 = vmatpush.msra.mxu0 0.0
      %719 = vmatpush.msra.mxu0 0.0
      %720 = vmatpush.msra.mxu0 0.0
      %721 = vmatpush.msra.mxu0 0.0
      %722 = vmatpush.msra.mxu0 0.0
      %723 = vmatpush.msra.mxu0 0.0
      %724 = vmatpush.msra.mxu0 0.0
      %725 = vmatpush.msra.mxu0 0.0
      %726 = vmatpush.msra.mxu0 0.0
      %727 = vmatpush.msra.mxu0 0.0
      %728 = vmatpush.msra.mxu0 0.0
      %729 = vmatpush.msra.mxu0 0.0
      %730 = vmatpush.msra.mxu0 0.0
      %731 = vmatpush.msra.mxu0 %v711
      %732 = vmatpush.msra.mxu0 %v709
      %733 = vmatmul.f32.gmra.mxu0 %v715
      %v734 = vpop.f32.mrf.mxu0
      %v735 = vadd.f32 0.0, %v734
      %736 = vdwg.mxu0
      %v737 = vmul.f32 %v735, %v707
      %739 = vrot.lane.b32.xlu0 %v737, 16
      %v740 = vpop.permute.xlu0 %739
      %vm742 = vcmask 195712
      %743 = vst.msk [vmem:[#allocation3] sm:$0xff] %vm742, %v740
      %744 = vrot.lane.b32.xlu0 %v496, 104
      %v745 = vpop.permute.xlu0 %744
      %746 = vrot.lane.b32.xlu0 %v497, 72
      %v747 = vpop.permute.xlu0 %746
      %748 = vrot.lane.b32.xlu0 %v498, 72
      %v749 = vpop.permute.xlu0 %748
      %v750 = vsel %vm509, %v745, 0
      %v752 = vsel %vm509, %v747, 0
      %v754 = vsel %vm509, %v749, 0
      %756 = vmatpush.xpose.msra.mxu0 0.0
      %757 = vmatpush.xpose.msra.mxu0 0.0
      %758 = vmatpush.xpose.msra.mxu0 0.0
      %759 = vmatpush.xpose.msra.mxu0 0.0
      %760 = vmatpush.xpose.msra.mxu0 0.0
      %761 = vmatpush.xpose.msra.mxu0 0.0
      %762 = vmatpush.xpose.msra.mxu0 0.0
      %763 = vmatpush.xpose.msra.mxu0 0.0
      %764 = vmatpush.xpose.msra.mxu0 0.0
      %765 = vmatpush.xpose.msra.mxu0 0.0
      %766 = vmatpush.xpose.msra.mxu0 0.0
      %767 = vmatpush.xpose.msra.mxu0 0.0
      %768 = vmatpush.xpose.msra.mxu0 0.0
      %769 = vmatpush.xpose.msra.mxu0 0.0
      %770 = vmatpush.xpose.msra.mxu0 %v754
      %771 = vmatpush.xpose.msra.mxu0 %v752
      %772 = vmatmul.f32.gmra.mxu0 %v750
      %v773 = vpop.f32.mrf.mxu0
      %v774 = vadd.f32 %v501, %v773
      %775 = vdwg.mxu0
      %v776 = vsel %vm537, %v774, -inf
      %777 = vmax.xlane.f32.xlu0 %v776
      %v778 = vpop.xlane.xlu0 %777
      %v779 = vsub.f32 %v774, %v778
      %v780 = vmul.f32 %v779, 1.442695
      %v781 = vpow.pop %v780
      %v782 = vsel %vm537, %v781, 0.0
      %783 = vadd.xlane.f32.xlu0 %v782
      %v784 = vpop.xlane.xlu0 %783
      %v785 = vrcp.pop %v784
      %v786 = vmul.f32 %v784, %v785
      %v787 = vsub.f32 2.0, %v786
      %v788 = vmul.f32 %v785, %v787
      %789 = vrot.lane.b32.xlu0 %v497, 40
      %v790 = vpop.permute.xlu0 %789
      %791 = vrot.lane.b32.xlu0 %v498, 40
      %v792 = vpop.permute.xlu0 %791
      %v796 = vsel %vm537, %v781, 0
      %798 = vmatpush.msra.mxu0 0.0
      %799 = vmatpush.msra.mxu0 0.0
      %800 = vmatpush.msra.mxu0 0.0
      %801 = vmatpush.msra.mxu0 0.0
      %802 = vmatpush.msra.mxu0 0.0
      %803 = vmatpush.msra.mxu0 0.0
      %804 = vmatpush.msra.mxu0 0.0
      %805 = vmatpush.msra.mxu0 0.0
      %806 = vmatpush.msra.mxu0 0.0
      %807 = vmatpush.msra.mxu0 0.0
      %808 = vmatpush.msra.mxu0 0.0
      %809 = vmatpush.msra.mxu0 0.0
      %810 = vmatpush.msra.mxu0 0.0
      %811 = vmatpush.msra.mxu0 0.0
      %812 = vmatpush.msra.mxu0 %v792
      %813 = vmatpush.msra.mxu0 %v790
      %814 = vmatmul.f32.gmra.mxu0 %v796
      %v815 = vpop.f32.mrf.mxu0
      %v816 = vadd.f32 0.0, %v815
      %817 = vdwg.mxu0
      %v818 = vmul.f32 %v816, %v788
      %820 = vrot.lane.b32.xlu0 %v818, 24
      %v821 = vpop.permute.xlu0 %820
      %vm823 = vcmask 261312
      %824 = vst.msk [vmem:[#allocation3] sm:$0xff] %vm823, %v821
      %v825 = vld [vmem:[#allocation3] sm:$0xff]
      %v826 = vld [vmem:[%s4] sm:$0xff]
      %v827 = vld [vmem:[%s4 + $0x8] sm:$0xff]
      %v828 = vld [vmem:[%s4 + $0x10] sm:$0xff]
      %v829 = vld [vmem:[%s4 + $0x18] sm:$0xff]
      %v830 = vld [vmem:[%s5] sm:$0x1]
      %v832 = vperm.slane %v830, 0
      %vm834 = vcmask 261120
      %v836 = vsel %vm834, %v825, 0
      %838 = vmatpush.msra.mxu0 0.0
      %839 = vmatpush.msra.mxu0 0.0
      %840 = vmatpush.msra.mxu0 0.0
      %841 = vmatpush.msra.mxu0 0.0
      %842 = vmatpush.msra.mxu0 0.0
      %843 = vmatpush.msra.mxu0 0.0
      %844 = vmatpush.msra.mxu0 0.0
      %845 = vmatpush.msra.mxu0 0.0
      %846 = vmatpush.msra.mxu0 0.0
      %847 = vmatpush.msra.mxu0 0.0
      %848 = vmatpush.msra.mxu0 0.0
      %849 = vmatpush.msra.mxu0 0.0
      %850 = vmatpush.msra.mxu0 %v829
      %851 = vmatpush.msra.mxu0 %v828
      %852 = vmatpush.msra.mxu0 %v827
      %853 = vmatpush.msra.mxu0 %v826
      %854 = vmatmul.f32.gmra.mxu0 %v836
      %v855 = vpop.f32.mrf.mxu0
      %v856 = vadd.f32 %v832, %v855
      %857 = vdwg.mxu0
      %v858 = vadd.f32 %v494, %v856
      %v859 = vsel %vm834, %v858, 0.0
      %860 = vadd.xlane.f32.xlu0 %v859
      %v861 = vpop.xlane.xlu0 %860
      %v862 = vrcp.pop 32.0
      %v863 = vmul.f32 32.0, %v862
      %v864 = vsub.f32 1.0, %v863
      %v865 = vmul.f32 %v862, %v864
      %v866 = vadd.f32 %v862, %v865
      %vm867 = vweird.f32 %v862
      %v868 = vsel %vm867, %v862, %v866
      %v869 = vmul.f32 %v861, %v868
      %v870 = vsub.f32 %v858, %v869
      %v871 = vmul.f32 %v870, %v870
      %v872 = vsel %vm834, %v871, 0.0
      %873 = vadd.xlane.f32.xlu0 %v872
      %v874 = vpop.xlane.xlu0 %873
      %v875 = vmul.f32 %v874, %v868
      %v876 = vadd.f32 %v875, 1e-06
      %v877 = vrsqrt.pop %v876
      %v878 = vmul.f32 %v877, %v876
      %v879 = vmul.f32 %v878, %v877
      %v880 = vmul.f32 0.5, %v879
      %v881 = vsub.f32 1.5, %v880
      %v882 = vmul.f32 %v877, %v881
      %vm883 = vweird.f32 %v876
      %vm884 = vweird.f32 %v877
      %vm885 = vmor %vm883, %vm884
      %v886 = vsel %vm885, %v877, %v882
      %v887 = vmul.f32 %v870, %v886
      %v888 = vld [vmem:[%s6] sm:$0xff]
      %v889 = vld [vmem:[%s6 + $0x8] sm:$0xff]
      %v890 = vld [vmem:[%s6 + $0x10] sm:$0xff]
      %v891 = vld [vmem:[%s6 + $0x18] sm:$0xff]
      %v892 = vld [vmem:[%s7] sm:$0x1]
      %v894 = vperm.slane %v892, 0
      %v897 = vsel %vm834, %v887, 0
      %899 = vmatpush.msra.mxu0 0.0
      %900 = vmatpush.msra.mxu0 0.0
      %901 = vmatpush.msra.mxu0 0.0
      %902 = vmatpush.msra.mxu0 0.0
      %903 = vmatpush.msra.mxu0 0.0
      %904 = vmatpush.msra.mxu0 0.0
      %905 = vmatpush.msra.mxu0 0.0
      %906 = vmatpush.msra.mxu0 0.0
      %907 = vmatpush.msra.mxu0 0.0
      %908 = vmatpush.msra.mxu0 0.0
      %909 = vmatpush.msra.mxu0 0.0
      %910 = vmatpush.msra.mxu0 0.0
      %911 = vmatpush.msra.mxu0 %v891
      %912 = vmatpush.msra.mxu0 %v890
      %913 = vmatpush.msra.mxu0 %v889
      %914 = vmatpush.msra.mxu0 %v888
      %915 = vmatmul.f32.gmra.mxu0 %v897
      %v916 = vpop.f32.mrf.mxu0
      %v917 = vadd.f32 %v894, %v916
      %918 = vdwg.mxu0
      %v919 = vmul.f32 %v917, 0.5
      %v920 = vmul.f32 %v917, 0.70710677
      %v921 = vmul.f32 %v920, %v920
      %v922 = vmin.f32 16.0, %v921
      %v923 = vmul.f32 %v922, 2.1237322e-06
      %v924 = vadd.f32 %v923, 0.00028619796
      %v925 = vmul.f32 %v922, %v924
      %v926 = vadd.f32 %v925, 0.0036580483
      %v927 = vmul.f32 %v922, %v926
      %v928 = vadd.f32 %v927, 0.05243302
      %v929 = vmul.f32 %v922, %v928
      %v930 = vadd.f32 %v929, 0.18741608
      %v931 = vmul.f32 %v922, %v930
      %v932 = vadd.f32 %v931, 1.1283791
      %v933 = vmul.f32 %v920, %v932
      %v934 = vmul.f32 %v922, 3.8918573e-05
      %v935 = vadd.f32 %v934, 0.001143296
      %v936 = vmul.f32 %v922, %v935
      %v937 = vadd.f32 %v936, 0.014752088
      %v938 = vmul.f32 %v922, %v937
      %v939 = vadd.f32 %v938, 0.112945676
      %v940 = vmul.f32 %v922, %v939
      %v941 = vadd.f32 %v940, 0.4994258
      %v942 = vmul.f32 %v922, %v941
      %v943 = vadd.f32 %v942, 1.0
      %v944 = vrcp.pop %v943
      %v945 = vmul.f32 %v943, %v944
      %v946 = vsub.f32 1.0, %v945
      %v947 = vmul.f32 %v944, %v946
      %v948 = vadd.f32 %v944, %v947
      %vm949 = vweird.f32 %v943
      %vm950 = vweird.f32 %v944
      %vm951 = vmor %vm949, %vm950
      %v952 = vsel %vm951, %v944, %v948
      %v953 = vand.u32 2147483647, %v943
      %vm954 = vcmp.eq.f32.partialorder %v953, 8.507059e+37
      %v955 = vand.u32 %v943, 2147483648
      %v956 = vor.u32 1.1754944e-38, %v955
      %v957 = vsel %vm954, %v956, %v952
      %v958 = vmul.f32 %v933, %v957
      %v959 = vmin.f32 %v958, 1.0
      %v960 = vmax.f32 %v959, -1.0
      %v961 = vadd.f32 %v960, 1.0
      %v962 = vmul.f32 %v919, %v961
      %v963 = vld [vmem:[%s8] sm:$0xff]
      %v964 = vld [vmem:[%s8 + $0x8] sm:$0xff]
      %v965 = vld [vmem:[%s8 + $0x10] sm:$0xff]
      %v966 = vld [vmem:[%s8 + $0x18] sm:$0xff]
      %v967 = vld [vmem:[%s8 + $0x20] sm:$0xff]
      %v968 = vld [vmem:[%s8 + $0x28] sm:$0xff]
      %v969 = vld [vmem:[%s8 + $0x30] sm:$0xff]
      %v970 = vld [vmem:[%s8 + $0x38] sm:$0xff]
      %v971 = vld [vmem:[%s9] sm:$0x1]
      %v973 = vperm.slane %v971, 0
      %vm975 = vcmask 523264
      %v977 = vsel %vm975, %v962, 0
      %979 = vmatpush.msra.mxu0 0.0
      %980 = vmatpush.msra.mxu0 0.0
      %981 = vmatpush.msra.mxu0 0.0
      %982 = vmatpush.msra.mxu0 0.0
      %983 = vmatpush.msra.mxu0 0.0
      %984 = vmatpush.msra.mxu0 0.0
      %985 = vmatpush.msra.mxu0 0.0
      %986 = vmatpush.msra.mxu0 0.0
      %987 = vmatpush.msra.mxu0 %v970
      %988 = vmatpush.msra.mxu0 %v969
      %989 = vmatpush.msra.mxu0 %v968
      %990 = vmatpush.msra.mxu0 %v967
      %991 = vmatpush.msra.mxu0 %v966
      %992 = vmatpush.msra.mxu0 %v965
      %993 = vmatpush.msra.mxu0 %v964
      %994 = vmatpush.msra.mxu0 %v963
      %995 = vmatmul.f32.gmra.mxu0 %v977
      %v996 = vpop.f32.mrf.mxu0
      %v997 = vadd.f32 %v973, %v996
      %998 = vdwg.mxu0
      %v999 = vadd.f32 %v858, %v997
      %1000 = vst.msk [vmem:[%s393] sm:$0xff] %vm834, %v999
      %p1001 = scmp.lt.s32.totalorder %s25, 1
      %s1002 = scalar_select %p1001, %s25, 1
      %p1003 = scmp.lt.s32.totalorder %s26, 1
      %s1004 = scalar_select %p1003, %s26, 1
      %s1005 = smul.addr %s1002, 2
      %s1006 = sadd.s32 %s1004, %s1005
      %s1007 = smul.addr %s1006, 8
      %s1008 = scalar_lea.vmem %s10, %s1007
      // Predicated region
      $region65: #{vit_block.1} parent=59 // pred_check
        %p1009 = pneg %p273
      $region66: #{vit_block.1} parent=59 // pred_check_branch
        %1011 = sbr.rel (%p1009) target = $region68
      $region67: #{vit_block.1} parent=59 // pred_region
        _
      $region68: #{vit_block.1} parent=59 // pred_fallthru
        _
    $region60: #{vit_block.1} parent=5 // pred_fallthru
      _
    %p1012 = scmp.le.s32.totalorder 2, %s16
    // Predicated region
    $region69: #{vit_block.1} parent=5 // pred_check
      %p1013 = pneg %p1012
    $region70: #{vit_block.1} parent=5 // pred_check_branch
      %1015 = sbr.rel (%p1013) target = $region72
    $region71: #{vit_block.1} parent=5 // pred_region
      %s1016 = ssub.s32 %s16, 2
      // Predicated region
      $region73: #{vit_block.1} parent=71 // pred_check
        %p1017 = pneg %p279
      $region74: #{vit_block.1} parent=71 // pred_check_branch
        %1019 = sbr.rel (%p1017) target = $region76
      $region75: #{vit_block.1} parent=71 // pred_region
        %p1020 = scmp.lt.s32.totalorder %s27, 1
        %s1021 = scalar_select %p1020, %s27, 1
        %p1022 = scmp.lt.s32.totalorder %s28, 1
        %s1023 = scalar_select %p1022, %s28, 1
        %s1024 = smul.addr %s1021, 2
        %s1025 = sadd.s32 %s1023, %s1024
        %s1026 = smul.addr %s1025, 8
        %s1027 = scalar_lea.vmem %s10, %s1026
      $region76: #{vit_block.1} parent=71 // pred_fallthru
        _
    $region72: #{vit_block.1} parent=5 // pred_fallthru
      _
  $region6: #{vit_block.1} parent=0 // loop_footer
    %s20 = sadd.s32 1, %s16
  $region7: #{vit_block.1} parent=0 // loop_footer_branch
    %15 = sbr.rel target = $region3
  $region8: #{vit_block.1} parent=0 // loop_exit
    _

</llo_original>
